<compile_context>
chip_gen: v5e
topology: v5e:2x2
jax: 0.10.0
libtpu: 0.0.40
codegen_flags: <defaults>
</compile_context>

<pallas_src>
import numpy as np
import jax
import jax.numpy as jnp
from jax.experimental import pallas as pl
from jax.experimental.pallas import tpu as pltpu


# ---------------------------------------------------------------------------
# Mask construction (mirrors MaskedConv2d.__init__ exactly, in numpy).
# ---------------------------------------------------------------------------
def build_mask(out_channels, in_channels, height, width, mask_type, data_channels):
    assert mask_type in ("A", "B")
    yc, xc = height // 2, width // 2
    mask = np.zeros((out_channels, in_channels, height, width), dtype=np.float32)
    mask[:, :, :yc, :] = 1
    mask[:, :, yc, : xc + 1] = 1

    def cmask(out_c, in_c):
        a = (np.arange(out_channels) % data_channels == out_c)[:, None]
        b = (np.arange(in_channels) % data_channels == in_c)[None, :]
        return a * b

    for o in range(data_channels):
        for i in range(o + 1, data_channels):
            mask[cmask(o, i), yc, xc] = 0
    if mask_type == "A":
        for c in range(data_channels):
            mask[cmask(c, c), yc, xc] = 0
    return mask


# ---------------------------------------------------------------------------
# Deterministic parameter init (PyTorch weight layouts: OIHW, biases (O,)).
# MaskedConv2d masks are folded into the weights (== weight.data *= mask).
# ---------------------------------------------------------------------------
def init_params(key, cin, cout, k, data_channels):
    kh = k // 2 + 1
    keys = jax.random.split(key, 13)

    def rnd(kk, shape, scale):
        return jax.random.normal(kk, shape, jnp.float32) * scale

    p = {}
    p["w_vconv"] = rnd(keys[0], (2 * cout, cin, kh, k), 0.2)
    p["b_vconv"] = rnd(keys[1], (2 * cout,), 0.1)
    p["w_vfc"] = rnd(keys[2], (2 * cout, cin, 1, 1), 0.2)
    p["b_vfc"] = rnd(keys[3], (2 * cout,), 0.1)
    p["w_vtoh"] = rnd(keys[4], (2 * cout, 2 * cout, 1, 1), 0.2) * jnp.asarray(
        build_mask(2 * cout, 2 * cout, 1, 1, "B", data_channels))
    p["b_vtoh"] = rnd(keys[5], (2 * cout,), 0.1)
    p["w_hconv"] = rnd(keys[6], (2 * cout, cin, 1, k), 0.2) * jnp.asarray(
        build_mask(2 * cout, cin, 1, k, "B", data_channels))
    p["b_hconv"] = rnd(keys[7], (2 * cout,), 0.1)
    p["w_hfc"] = rnd(keys[8], (cout, cout, 1, 1), 0.2) * jnp.asarray(
        build_mask(cout, cout, 1, 1, "B", data_channels))
    p["b_hfc"] = rnd(keys[9], (cout,), 0.1)
    p["w_hskip"] = rnd(keys[10], (cout, cout, 1, 1), 0.2) * jnp.asarray(
        build_mask(cout, cout, 1, 1, "B", data_channels))
    p["b_hskip"] = rnd(keys[11], (cout,), 0.1)
    p["emb"] = rnd(keys[12], (10, 2 * cout), 0.2)
    return p


# ---------------------------------------------------------------------------
# Pack weights into ONE (2Co, 93) slab; pre-fuse all bias constants.
#   cols [0, kh*kw*Cp)            im2col vertical-conv weight   (Cp = cin padded to 8)
#   cols [+, + kw*Cp + 2Co)       fused [w_hconv | w_vtoh]
#   cols [+, + Cp)                v_fc 1x1 (channel-padded)
#   cols [+, + Co)                [h_fc ; h_skip] stacked heads
#   last col                      b_heads = [b_hfc ; b_hskip]
# Per-sample bias columns (bias_v0/bias_h0 + label emb) are built in the wrapper.
# ---------------------------------------------------------------------------
def to_kernel_params(p, ksize):
    c2, cin = p["w_vconv"].shape[0], p["w_vconv"].shape[1]
    kh, kw = ksize // 2 + 1, ksize
    cp = -(-cin // 8) * 8               # pad input channels to a full sublane group
    padc = cp - cin

    w_vconv = jnp.transpose(p["w_vconv"], (0, 2, 3, 1))                   # (2Co,kh,kw,Ci)
    w_vconv = jnp.pad(w_vconv, ((0, 0), (0, 0), (0, 0), (0, padc)))
    w_vconv = w_vconv.reshape(c2, kh * kw * cp)

    w_hconv = jnp.transpose(p["w_hconv"][:, :, 0, :], (0, 2, 1))          # (2Co,kw,Ci)
    w_hconv = jnp.pad(w_hconv, ((0, 0), (0, 0), (0, padc))).reshape(c2, kw * cp)
    w_vtoh = p["w_vtoh"][:, :, 0, 0]                                      # (2Co, 2Co)
    w_hfused = jnp.concatenate([w_hconv, w_vtoh], axis=1)                 # (2Co, kw*Cp+2Co)

    w_vfc = jnp.pad(p["w_vfc"][:, :, 0, 0], ((0, 0), (0, padc)))          # (2Co, Cp)
    w_heads = jnp.concatenate(
        [p["w_hfc"][:, :, 0, 0], p["w_hskip"][:, :, 0, 0]], axis=0)       # (2Co, Co)
    b_heads = jnp.concatenate([p["b_hfc"], p["b_hskip"]])[:, None]        # (2Co, 1)

    w_all = jnp.concatenate([w_vconv, w_hfused, w_vfc, w_heads, b_heads],
                            axis=1).astype(jnp.float32)

    # constant bias parts (label embedding added per-sample in the wrapper)
    bias_v0 = p["b_vconv"] + p["b_vfc"]
    bias_h0 = p["b_hconv"] + p["b_vtoh"] + w_vtoh @ p["b_vconv"]
    return {"w_all": w_all, "emb": p["emb"],
            "bias_v0": bias_v0, "bias_h0": bias_h0, "cin_pad": cp}


def _choose_nb(n, cap=8):
    """Largest batch-block <= cap dividing n; prefer an even grid length (v7x)."""
    divisors = [d for d in range(1, min(n, cap) + 1) if n % d == 0]
    even_grid = [d for d in divisors if (n // d) % 2 == 0]
    return max(even_grid) if even_grid else max(divisors)


# ---------------------------------------------------------------------------
# Wrapper + kernel.  NCHW in / NCHW out; channels-on-sublanes, flattened padded
# spatial on lanes inside the kernel.
# ---------------------------------------------------------------------------
def gated_block_pallas(v_in, h_in, skip, label, kparams, ksize):
    n, cin, H, W = v_in.shape
    c2 = kparams["emb"].shape[1]
    co = c2 // 2
    cp = kparams["cin_pad"]
    assert cin == co, "GatedBlock residual adds require in_channels == out_channels"
    assert cp >= cin and cp % 8 == 0
    kh, kw, pw = ksize // 2 + 1, ksize, ksize // 2

    # lane-dense padded row width: smallest Wp >= W + kw with H*Wp % 128 == 0
    Wp = W + kw
    while (H * Wp) % 128 != 0:
        Wp += 1
    Lo = H * Wp                      # flattened output length (valid cols 1..W per row)
    Hv = H + kh + 1                  # vconv input rows: kh top pad + H + 1 bottom pad
    Hh = H + 1                       # hconv input rows: H + 1 bottom pad row
    Lv = (H + 1) * Wp                # vertical-conv output rows 0..H, flattened
    Lvp, Lhp = Hv * Wp, Hh * Wp

    # static weight-slab column offsets
    nv = kh * kw * cp
    nhf = kw * cp + c2
    o_hf = nv
    o_vfc = o_hf + nhf
    o_heads = o_vfc + cp
    o_bhead = o_heads + co
    wcols = o_bhead + 1
    w_all = kparams["w_all"]
    assert w_all.shape == (c2, wcols)

    # static lane-shift offsets of the flattened padded inputs
    offs_v = tuple(dy * Wp + dx for dy in range(kh) for dx in range(kw))
    off_vin = kh * Wp + pw           # v_in viewed in output coordinates
    off_hin = pw                     # h_in viewed in output coordinates

    f32 = jnp.float32
    right = Wp - W - pw - 1
    vp = jnp.pad(v_in.astype(f32),
                 ((0, 0), (0, cp - cin), (kh, 1), (pw + 1, right))).reshape(n, cp, Lvp)
    hp = jnp.pad(h_in.astype(f32),
                 ((0, 0), (0, cp - cin), (0, 1), (pw + 1, right))).reshape(n, cp, Lhp)
    sp = jnp.pad(skip.astype(f32),
                 ((0, 0), (0, 0), (0, 0), (1, Wp - W - 1))).reshape(n, co, Lo)
    # label embedding folded with conv biases into two per-sample bias columns
    lab = kparams["emb"][label.astype(jnp.int32)].astype(f32)             # (N, 2Co)
    bias = jnp.stack([kparams["bias_v0"][None, :] + lab,
                      kparams["bias_h0"][None, :] + lab], axis=-1).astype(f32)  # (N,2Co,2)

    NB = _choose_nb(n)
    grid = (n // NB,)

    def _sigmoid(x):
        # exact identity: sigmoid(x) = 0.5*(1 + tanh(x/2)) -> EUP, no VALU divide
        return 0.5 * jnp.tanh(0.5 * x) + 0.5

    def kernel(vp_ref, hp_ref, sp_ref, bias_ref, w_ref, out_ref):
        wall = w_ref[...]                               # (2Co, wcols) packed slab
        w_vconv = wall[:, 0:nv]
        w_hf = wall[:, o_hf:o_hf + nhf]
        w_vfc = wall[:, o_vfc:o_vfc + cp]
        w_heads = wall[:, o_heads:o_heads + co]
        b_heads = wall[:, o_bhead:o_bhead + 1]

        dotf = lambda a, b: jnp.dot(a, b, preferred_element_type=jnp.float32)

        # statically unrolled per-sample loop over the batch block (NB is small)
        for s in range(NB):
            vp_ = vp_ref[s]                             # (Cp, Lvp)
            hp_ = hp_ref[s]                             # (Cp, Lhp)
            bb = bias_ref[s]                            # (2Co, 2)
            b_v = bb[:, 0:1]
            b_h = bb[:, 1:2]

            # ---- vertical CroppedConv2d: one fused im2col matmul (no bias) ----
            pv = jnp.concatenate([vp_[:, o:o + Lv] for o in offs_v], axis=0)  # (kh*kw*Cp, Lv)
            full = dotf(w_vconv, pv)                                          # (2Co, Lv)
            v_shift = full[:, 0:Lo]          # rows 0..H-1  (== x[:, :, :-kh-1, :])
            v_res = full[:, Wp:Wp + Lo]      # rows 1..H    (== x[:, :, 1:-kh, :])

            # ---- v_out = crop + v_fc(v_in) + (biases + label) ; gate ----
            v_in_ = vp_[:, off_vin:off_vin + Lo]                              # (Cp, Lo)
            v_pre = v_res + dotf(w_vfc, v_in_) + b_v
            v_gate = jnp.tanh(v_pre[:co]) * _sigmoid(v_pre[co:])

            # ---- fused horizontal masked conv + v_to_h: ONE matmul ----
            ph = jnp.concatenate(
                [hp_[:, dx:dx + Lo] for dx in range(kw)] + [v_shift], axis=0)  # (kw*Cp+2Co, Lo)
            h_pre = dotf(w_hf, ph) + b_h
            h_gate = jnp.tanh(h_pre[:co]) * _sigmoid(h_pre[co:])

            # ---- fused heads: rows [0:co] = h_fc, rows [co:2co] = h_skip ----
            heads = dotf(w_heads, h_gate) + b_heads                            # (2Co, Lo)

            # ---- direct slice stores (no concat, no (3Co, Lo) temp) ----
            h_in_ = hp_[:co, off_hin:off_hin + Lo]
            out_ref[s, 0:co] = v_gate + v_in_[:co]              # v_out
            out_ref[s, co:2 * co] = heads[:co] + h_in_          # h_out
            out_ref[s, 2 * co:3 * co] = heads[co:] + sp_ref[s]  # skip_out

    grid_spec = pltpu.PrefetchScalarGridSpec(
        num_scalar_prefetch=0,
        grid=grid,
        in_specs=[
            pl.BlockSpec((NB, cp, Lvp), lambda b: (b, 0, 0)),
            pl.BlockSpec((NB, cp, Lhp), lambda b: (b, 0, 0)),
            pl.BlockSpec((NB, co, Lo), lambda b: (b, 0, 0)),
            pl.BlockSpec((NB, c2, 2), lambda b: (b, 0, 0)),
            pl.BlockSpec((c2, wcols), lambda b: (0, 0)),        # weight slab stays resident
        ],
        out_specs=pl.BlockSpec((NB, 3 * co, Lo), lambda b: (b, 0, 0)),
    )
    # VMEM per step is ~0.2 MiB here; set vmem_limit_bytes explicitly once NB /
    # channel widths grow (v7x: 64 MiB physical, 32 MiB scoped default).
    slab = pl.pallas_call(
        kernel,
        out_shape=jax.ShapeDtypeStruct((n, 3 * co, Lo), jnp.float32),
        grid_spec=grid_spec,
        compiler_params=pltpu.CompilerParams(dimension_semantics=("parallel",)),
    )(vp, hp, sp, bias, w_all)

    # one cheap crop: drop the don't-care columns, split the 3 stacked outputs
    slab = slab.reshape(n, 3 * co, H, Wp)[:, :, :, 1:W + 1]
    return {0: slab[:, 0:co], 1: slab[:, co:2 * co], 2: slab[:, 2 * co:3 * co], 3: label}


# ---------------------------------------------------------------------------
# Pure-JAX reference (NCHW, lax.conv) mirroring the PyTorch forward exactly.
# ---------------------------------------------------------------------------
def reference_forward(v_in, h_in, skip, label, p, co, k):
    def conv(x, wmat, b, pad):
        y = jax.lax.conv_general_dilated(
            x, wmat, window_strides=(1, 1),
            padding=((pad[0], pad[0]), (pad[1], pad[1])),
            dimension_numbers=("NCHW", "OIHW", "NCHW"),
            precision=jax.lax.Precision.HIGHEST)
        return y + b[None, :, None, None]

    def sigmoid(x):
        return 1.0 / (1.0 + jnp.exp(-x))

    kh = k // 2 + 1
    lab = p["emb"][label][:, :, None, None]
    vc = conv(v_in, p["w_vconv"], p["b_vconv"], (kh, k // 2))
    v_res = vc[:, :, 1:-kh, :]
    v_shift = vc[:, :, : -(kh + 1), :]
    v_out = v_res + conv(v_in, p["w_vfc"], p["b_vfc"], (0, 0)) + lab
    v_out = jnp.tanh(v_out[:, :co]) * sigmoid(v_out[:, co:])
    h_out = conv(h_in, p["w_hconv"], p["b_hconv"], (0, k // 2))
    v2h = conv(v_shift, p["w_vtoh"], p["b_vtoh"], (0, 0))
    h_out = h_out + v2h + lab
    h_out = jnp.tanh(h_out[:, :co]) * sigmoid(h_out[:, co:])
    skip_out = skip + conv(h_out, p["w_hskip"], p["b_hskip"], (0, 0))
    h_final = conv(h_out, p["w_hfc"], p["b_hfc"], (0, 0)) + h_in
    v_final = v_out + v_in
    return v_final, h_final, skip_out


if __name__ == "__main__":
    N, C, H, W = 4, 4, 16, 16          # in_channels == out_channels == 4
    KSIZE = 3
    DATA_CHANNELS = 2

    key = jax.random.PRNGKey(0)
    k_data, k_param = jax.random.split(key)
    kv, khh, ks, kl = jax.random.split(k_data, 4)
    v_in = jax.random.normal(kv, (N, C, H, W), jnp.float32)
    h_in = jax.random.normal(khh, (N, C, H, W), jnp.float32)
    skip = jax.random.normal(ks, (N, C, H, W), jnp.float32)
    label = jax.random.randint(kl, (N,), 0, 10)

    params = init_params(k_param, C, C, KSIZE, DATA_CHANNELS)
    kparams = to_kernel_params(params, KSIZE)

    out = gated_block_pallas(v_in, h_in, skip, label, kparams, KSIZE)
    jax.block_until_ready((out[0], out[1], out[2]))

    # Correctness check against an independent pure-JAX reference (HIGHEST precision).
    # Kernel matmuls use the MXU default f32 path, so allow a small numeric margin;
    # any indexing/layout bug would produce O(1) errors and still be caught.
    v_r, h_r, s_r = reference_forward(v_in, h_in, skip, label, params, C, KSIZE)
    np.testing.assert_allclose(np.asarray(out[0]), np.asarray(v_r), rtol=1e-2, atol=1e-2)
    np.testing.assert_allclose(np.asarray(out[1]), np.asarray(h_r), rtol=1e-2, atol=1e-2)
    np.testing.assert_allclose(np.asarray(out[2]), np.asarray(s_r), rtol=1e-2, atol=1e-2)
    assert jnp.array_equal(out[3], label)

    print("KERNEL_OK")
</pallas_src>

<mosaic_0001>
module attributes {stable_mosaic.version = 11 : i64} {
  func.func @kernel(%arg0: i32, %arg1: memref<2x8x456xf32, #tpu.memory_space<vmem>>, %arg2: memref<2x8x408xf32, #tpu.memory_space<vmem>>, %arg3: memref<2x4x384xf32, #tpu.memory_space<vmem>>, %arg4: memref<2x8x2xf32, #tpu.memory_space<vmem>>, %arg5: memref<8x93xf32, #tpu.memory_space<vmem>>, %arg6: memref<2x12x384xf32, #tpu.memory_space<vmem>>) attributes {dimension_semantics = [#tpu.dimension_semantics<parallel>], iteration_bounds = array<i64: 2>, scalar_prefetch = 0 : i64, scratch_operands = 0 : i64, tpu.core_type = #tpu.core_type<tc>, window_params = [{transform_indices = @transform_0, window_bounds = array<i64: 2, 8, 456>}, {transform_indices = @transform_1, window_bounds = array<i64: 2, 8, 408>}, {transform_indices = @transform_2, window_bounds = array<i64: 2, 4, 384>}, {transform_indices = @transform_3, window_bounds = array<i64: 2, 8, 2>}, {pipeline_mode = #tpu.pipeline_mode<synchronous>, transform_indices = @transform_4, window_bounds = array<i64: 8, 93>}, {transform_indices = @transform_5, window_bounds = array<i64: 2, 12, 384>}]} {
    %c0 = arith.constant 0 : index
    %c0_0 = arith.constant 0 : index
    %0 = vector.load %arg5[%c0, %c0_0] : memref<8x93xf32, #tpu.memory_space<vmem>>, vector<8x93xf32>
    %1 = vector.extract_strided_slice %0 {offsets = [0, 0], sizes = [8, 48], strides = [1, 1]} : vector<8x93xf32> to vector<8x48xf32>
    %2 = vector.extract_strided_slice %0 {offsets = [0, 48], sizes = [8, 32], strides = [1, 1]} : vector<8x93xf32> to vector<8x32xf32>
    %3 = vector.extract_strided_slice %0 {offsets = [0, 80], sizes = [8, 8], strides = [1, 1]} : vector<8x93xf32> to vector<8x8xf32>
    %4 = vector.extract_strided_slice %0 {offsets = [0, 88], sizes = [8, 4], strides = [1, 1]} : vector<8x93xf32> to vector<8x4xf32>
    %5 = vector.extract_strided_slice %0 {offsets = [0, 92], sizes = [8, 1], strides = [1, 1]} : vector<8x93xf32> to vector<8x1xf32>
    %c0_1 = arith.constant 0 : index
    %c0_2 = arith.constant 0 : index
    %c0_3 = arith.constant 0 : index
    %6 = vector.load %arg1[%c0_1, %c0_2, %c0_3] : memref<2x8x456xf32, #tpu.memory_space<vmem>>, vector<1x8x456xf32>
    %7 = vector.shape_cast %6 : vector<1x8x456xf32> to vector<8x456xf32>
    %c0_4 = arith.constant 0 : index
    %c0_5 = arith.constant 0 : index
    %c0_6 = arith.constant 0 : index
    %8 = vector.load %arg2[%c0_4, %c0_5, %c0_6] : memref<2x8x408xf32, #tpu.memory_space<vmem>>, vector<1x8x408xf32>
    %9 = vector.shape_cast %8 : vector<1x8x408xf32> to vector<8x408xf32>
    %c0_7 = arith.constant 0 : index
    %c0_8 = arith.constant 0 : index
    %c0_9 = arith.constant 0 : index
    %10 = vector.load %arg4[%c0_7, %c0_8, %c0_9] : memref<2x8x2xf32, #tpu.memory_space<vmem>>, vector<1x8x2xf32>
    %11 = vector.shape_cast %10 : vector<1x8x2xf32> to vector<8x2xf32>
    %12 = vector.extract_strided_slice %11 {offsets = [0, 0], sizes = [8, 1], strides = [1, 1]} : vector<8x2xf32> to vector<8x1xf32>
    %13 = vector.extract_strided_slice %11 {offsets = [0, 1], sizes = [8, 1], strides = [1, 1]} : vector<8x2xf32> to vector<8x1xf32>
    %14 = vector.extract_strided_slice %7 {offsets = [0, 0], sizes = [8, 408], strides = [1, 1]} : vector<8x456xf32> to vector<8x408xf32>
    %15 = vector.extract_strided_slice %7 {offsets = [0, 1], sizes = [8, 408], strides = [1, 1]} : vector<8x456xf32> to vector<8x408xf32>
    %16 = vector.extract_strided_slice %7 {offsets = [0, 2], sizes = [8, 408], strides = [1, 1]} : vector<8x456xf32> to vector<8x408xf32>
    %17 = vector.extract_strided_slice %7 {offsets = [0, 24], sizes = [8, 408], strides = [1, 1]} : vector<8x456xf32> to vector<8x408xf32>
    %18 = vector.extract_strided_slice %7 {offsets = [0, 25], sizes = [8, 408], strides = [1, 1]} : vector<8x456xf32> to vector<8x408xf32>
    %19 = vector.extract_strided_slice %7 {offsets = [0, 26], sizes = [8, 408], strides = [1, 1]} : vector<8x456xf32> to vector<8x408xf32>
    %20 = tpu.concatenate %14, %15, %16, %17, %18, %19 in 0 : vector<8x408xf32>, vector<8x408xf32>, vector<8x408xf32>, vector<8x408xf32>, vector<8x408xf32>, vector<8x408xf32> -> vector<48x408xf32>
    %cst = arith.constant dense<0.000000e+00> : vector<8x408xf32>
    %21 = tpu.matmul %1, %20, %cst {dimension_numbers = #tpu.dot_dimension_numbers<[1], [0], [0], [1], [0, 0, 1, 1], [], []>} : vector<8x48xf32>, vector<48x408xf32>, vector<8x408xf32> -> vector<8x408xf32>
    %22 = vector.extract_strided_slice %21 {offsets = [0, 0], sizes = [8, 384], strides = [1, 1]} : vector<8x408xf32> to vector<8x384xf32>
    %23 = vector.extract_strided_slice %21 {offsets = [0, 24], sizes = [8, 384], strides = [1, 1]} : vector<8x408xf32> to vector<8x384xf32>
    %24 = vector.extract_strided_slice %7 {offsets = [0, 49], sizes = [8, 384], strides = [1, 1]} : vector<8x456xf32> to vector<8x384xf32>
    %cst_10 = arith.constant dense<0.000000e+00> : vector<8x384xf32>
    %25 = tpu.matmul %3, %24, %cst_10 {dimension_numbers = #tpu.dot_dimension_numbers<[1], [0], [0], [1], [0, 0, 1, 1], [], []>} : vector<8x8xf32>, vector<8x384xf32>, vector<8x384xf32> -> vector<8x384xf32>
    %26 = arith.addf %23, %25 : vector<8x384xf32>
    %27 = vector.broadcast %12 : vector<8x1xf32> to vector<8x384xf32>
    %28 = arith.addf %26, %27 : vector<8x384xf32>
    %29 = vector.extract_strided_slice %28 {offsets = [0, 0], sizes = [4, 384], strides = [1, 1]} : vector<8x384xf32> to vector<4x384xf32>
    %30 = math.tanh %29 : vector<4x384xf32>
    %31 = vector.extract_strided_slice %28 {offsets = [4, 0], sizes = [4, 384], strides = [1, 1]} : vector<8x384xf32> to vector<4x384xf32>
    %cst_11 = arith.constant 5.000000e-01 : f32
    %32 = vector.broadcast %cst_11 : f32 to vector<4x384xf32>
    %33 = arith.mulf %32, %31 : vector<4x384xf32>
    %34 = math.tanh %33 : vector<4x384xf32>
    %cst_12 = arith.constant 5.000000e-01 : f32
    %35 = vector.broadcast %cst_12 : f32 to vector<4x384xf32>
    %36 = arith.mulf %35, %34 : vector<4x384xf32>
    %cst_13 = arith.constant 5.000000e-01 : f32
    %37 = vector.broadcast %cst_13 : f32 to vector<4x384xf32>
    %38 = arith.addf %36, %37 : vector<4x384xf32>
    %39 = arith.mulf %30, %38 : vector<4x384xf32>
    %40 = vector.extract_strided_slice %9 {offsets = [0, 0], sizes = [8, 384], strides = [1, 1]} : vector<8x408xf32> to vector<8x384xf32>
    %41 = vector.extract_strided_slice %9 {offsets = [0, 1], sizes = [8, 384], strides = [1, 1]} : vector<8x408xf32> to vector<8x384xf32>
    %42 = vector.extract_strided_slice %9 {offsets = [0, 2], sizes = [8, 384], strides = [1, 1]} : vector<8x408xf32> to vector<8x384xf32>
    %43 = tpu.concatenate %40, %41, %42, %22 in 0 : vector<8x384xf32>, vector<8x384xf32>, vector<8x384xf32>, vector<8x384xf32> -> vector<32x384xf32>
    %cst_14 = arith.constant dense<0.000000e+00> : vector<8x384xf32>
    %44 = tpu.matmul %2, %43, %cst_14 {dimension_numbers = #tpu.dot_dimension_numbers<[1], [0], [0], [1], [0, 0, 1, 1], [], []>} : vector<8x32xf32>, vector<32x384xf32>, vector<8x384xf32> -> vector<8x384xf32>
    %45 = vector.broadcast %13 : vector<8x1xf32> to vector<8x384xf32>
    %46 = arith.addf %44, %45 : vector<8x384xf32>
    %47 = vector.extract_strided_slice %46 {offsets = [0, 0], sizes = [4, 384], strides = [1, 1]} : vector<8x384xf32> to vector<4x384xf32>
    %48 = math.tanh %47 : vector<4x384xf32>
    %49 = vector.extract_strided_slice %46 {offsets = [4, 0], sizes = [4, 384], strides = [1, 1]} : vector<8x384xf32> to vector<4x384xf32>
    %cst_15 = arith.constant 5.000000e-01 : f32
    %50 = vector.broadcast %cst_15 : f32 to vector<4x384xf32>
    %51 = arith.mulf %50, %49 : vector<4x384xf32>
    %52 = math.tanh %51 : vector<4x384xf32>
    %cst_16 = arith.constant 5.000000e-01 : f32
    %53 = vector.broadcast %cst_16 : f32 to vector<4x384xf32>
    %54 = arith.mulf %53, %52 : vector<4x384xf32>
    %cst_17 = arith.constant 5.000000e-01 : f32
    %55 = vector.broadcast %cst_17 : f32 to vector<4x384xf32>
    %56 = arith.addf %54, %55 : vector<4x384xf32>
    %57 = arith.mulf %48, %56 : vector<4x384xf32>
    %cst_18 = arith.constant dense<0.000000e+00> : vector<8x384xf32>
    %58 = tpu.matmul %4, %57, %cst_18 {dimension_numbers = #tpu.dot_dimension_numbers<[1], [0], [0], [1], [0, 0, 1, 1], [], []>} : vector<8x4xf32>, vector<4x384xf32>, vector<8x384xf32> -> vector<8x384xf32>
    %59 = vector.broadcast %5 : vector<8x1xf32> to vector<8x384xf32>
    %60 = arith.addf %58, %59 : vector<8x384xf32>
    %61 = vector.extract_strided_slice %9 {offsets = [0, 1], sizes = [4, 384], strides = [1, 1]} : vector<8x408xf32> to vector<4x384xf32>
    %62 = vector.extract_strided_slice %24 {offsets = [0, 0], sizes = [4, 384], strides = [1, 1]} : vector<8x384xf32> to vector<4x384xf32>
    %63 = arith.addf %39, %62 : vector<4x384xf32>
    %c0_19 = arith.constant 0 : index
    %c0_20 = arith.constant 0 : index
    %c0_21 = arith.constant 0 : index
    %64 = vector.load %arg6[%c0_19, %c0_20, %c0_21] : memref<2x12x384xf32, #tpu.memory_space<vmem>>, vector<1x4x384xf32>
    %65 = vector.shape_cast %64 : vector<1x4x384xf32> to vector<4x384xf32>
    %66 = vector.shape_cast %63 : vector<4x384xf32> to vector<1x4x384xf32>
    tpu.vector_store %arg6[%c0_19, %c0_20, %c0_21], %66 {strides = array<i32>} : memref<2x12x384xf32, #tpu.memory_space<vmem>>, vector<1x4x384xf32>,
    %67 = vector.extract_strided_slice %60 {offsets = [0, 0], sizes = [4, 384], strides = [1, 1]} : vector<8x384xf32> to vector<4x384xf32>
    %68 = arith.addf %67, %61 : vector<4x384xf32>
    %c0_22 = arith.constant 0 : index
    %c4 = arith.constant 4 : index
    %c0_23 = arith.constant 0 : index
    %69 = vector.load %arg6[%c0_22, %c4, %c0_23] : memref<2x12x384xf32, #tpu.memory_space<vmem>>, vector<1x4x384xf32>
    %70 = vector.shape_cast %69 : vector<1x4x384xf32> to vector<4x384xf32>
    %71 = vector.shape_cast %68 : vector<4x384xf32> to vector<1x4x384xf32>
    tpu.vector_store %arg6[%c0_22, %c4, %c0_23], %71 {strides = array<i32>} : memref<2x12x384xf32, #tpu.memory_space<vmem>>, vector<1x4x384xf32>,
    %72 = vector.extract_strided_slice %60 {offsets = [4, 0], sizes = [4, 384], strides = [1, 1]} : vector<8x384xf32> to vector<4x384xf32>
    %c0_24 = arith.constant 0 : index
    %c0_25 = arith.constant 0 : index
    %c0_26 = arith.constant 0 : index
    %73 = vector.load %arg3[%c0_24, %c0_25, %c0_26] : memref<2x4x384xf32, #tpu.memory_space<vmem>>, vector<1x4x384xf32>
    %74 = vector.shape_cast %73 : vector<1x4x384xf32> to vector<4x384xf32>
    %75 = arith.addf %72, %74 : vector<4x384xf32>
    %c0_27 = arith.constant 0 : index
    %c8 = arith.constant 8 : index
    %c0_28 = arith.constant 0 : index
    %76 = vector.load %arg6[%c0_27, %c8, %c0_28] : memref<2x12x384xf32, #tpu.memory_space<vmem>>, vector<1x4x384xf32>
    %77 = vector.shape_cast %76 : vector<1x4x384xf32> to vector<4x384xf32>
    %78 = vector.shape_cast %75 : vector<4x384xf32> to vector<1x4x384xf32>
    tpu.vector_store %arg6[%c0_27, %c8, %c0_28], %78 {strides = array<i32>} : memref<2x12x384xf32, #tpu.memory_space<vmem>>, vector<1x4x384xf32>,
    %c1 = arith.constant 1 : index
    %c0_29 = arith.constant 0 : index
    %c0_30 = arith.constant 0 : index
    %79 = vector.load %arg1[%c1, %c0_29, %c0_30] : memref<2x8x456xf32, #tpu.memory_space<vmem>>, vector<1x8x456xf32>
    %80 = vector.shape_cast %79 : vector<1x8x456xf32> to vector<8x456xf32>
    %c1_31 = arith.constant 1 : index
    %c0_32 = arith.constant 0 : index
    %c0_33 = arith.constant 0 : index
    %81 = vector.load %arg2[%c1_31, %c0_32, %c0_33] : memref<2x8x408xf32, #tpu.memory_space<vmem>>, vector<1x8x408xf32>
    %82 = vector.shape_cast %81 : vector<1x8x408xf32> to vector<8x408xf32>
    %c1_34 = arith.constant 1 : index
    %c0_35 = arith.constant 0 : index
    %c0_36 = arith.constant 0 : index
    %83 = vector.load %arg4[%c1_34, %c0_35, %c0_36] : memref<2x8x2xf32, #tpu.memory_space<vmem>>, vector<1x8x2xf32>
    %84 = vector.shape_cast %83 : vector<1x8x2xf32> to vector<8x2xf32>
    %85 = vector.extract_strided_slice %84 {offsets = [0, 0], sizes = [8, 1], strides = [1, 1]} : vector<8x2xf32> to vector<8x1xf32>
    %86 = vector.extract_strided_slice %84 {offsets = [0, 1], sizes = [8, 1], strides = [1, 1]} : vector<8x2xf32> to vector<8x1xf32>
    %87 = vector.extract_strided_slice %80 {offsets = [0, 0], sizes = [8, 408], strides = [1, 1]} : vector<8x456xf32> to vector<8x408xf32>
    %88 = vector.extract_strided_slice %80 {offsets = [0, 1], sizes = [8, 408], strides = [1, 1]} : vector<8x456xf32> to vector<8x408xf32>
    %89 = vector.extract_strided_slice %80 {offsets = [0, 2], sizes = [8, 408], strides = [1, 1]} : vector<8x456xf32> to vector<8x408xf32>
    %90 = vector.extract_strided_slice %80 {offsets = [0, 24], sizes = [8, 408], strides = [1, 1]} : vector<8x456xf32> to vector<8x408xf32>
    %91 = vector.extract_strided_slice %80 {offsets = [0, 25], sizes = [8, 408], strides = [1, 1]} : vector<8x456xf32> to vector<8x408xf32>
    %92 = vector.extract_strided_slice %80 {offsets = [0, 26], sizes = [8, 408], strides = [1, 1]} : vector<8x456xf32> to vector<8x408xf32>
    %93 = tpu.concatenate %87, %88, %89, %90, %91, %92 in 0 : vector<8x408xf32>, vector<8x408xf32>, vector<8x408xf32>, vector<8x408xf32>, vector<8x408xf32>, vector<8x408xf32> -> vector<48x408xf32>
    %cst_37 = arith.constant dense<0.000000e+00> : vector<8x408xf32>
    %94 = tpu.matmul %1, %93, %cst_37 {dimension_numbers = #tpu.dot_dimension_numbers<[1], [0], [0], [1], [0, 0, 1, 1], [], []>} : vector<8x48xf32>, vector<48x408xf32>, vector<8x408xf32> -> vector<8x408xf32>
    %95 = vector.extract_strided_slice %94 {offsets = [0, 0], sizes = [8, 384], strides = [1, 1]} : vector<8x408xf32> to vector<8x384xf32>
    %96 = vector.extract_strided_slice %94 {offsets = [0, 24], sizes = [8, 384], strides = [1, 1]} : vector<8x408xf32> to vector<8x384xf32>
    %97 = vector.extract_strided_slice %80 {offsets = [0, 49], sizes = [8, 384], strides = [1, 1]} : vector<8x456xf32> to vector<8x384xf32>
    %cst_38 = arith.constant dense<0.000000e+00> : vector<8x384xf32>
    %98 = tpu.matmul %3, %97, %cst_38 {dimension_numbers = #tpu.dot_dimension_numbers<[1], [0], [0], [1], [0, 0, 1, 1], [], []>} : vector<8x8xf32>, vector<8x384xf32>, vector<8x384xf32> -> vector<8x384xf32>
    %99 = arith.addf %96, %98 : vector<8x384xf32>
    %100 = vector.broadcast %85 : vector<8x1xf32> to vector<8x384xf32>
    %101 = arith.addf %99, %100 : vector<8x384xf32>
    %102 = vector.extract_strided_slice %101 {offsets = [0, 0], sizes = [4, 384], strides = [1, 1]} : vector<8x384xf32> to vector<4x384xf32>
    %103 = math.tanh %102 : vector<4x384xf32>
    %104 = vector.extract_strided_slice %101 {offsets = [4, 0], sizes = [4, 384], strides = [1, 1]} : vector<8x384xf32> to vector<4x384xf32>
    %cst_39 = arith.constant 5.000000e-01 : f32
    %105 = vector.broadcast %cst_39 : f32 to vector<4x384xf32>
    %106 = arith.mulf %105, %104 : vector<4x384xf32>
    %107 = math.tanh %106 : vector<4x384xf32>
    %cst_40 = arith.constant 5.000000e-01 : f32
    %108 = vector.broadcast %cst_40 : f32 to vector<4x384xf32>
    %109 = arith.mulf %108, %107 : vector<4x384xf32>
    %cst_41 = arith.constant 5.000000e-01 : f32
    %110 = vector.broadcast %cst_41 : f32 to vector<4x384xf32>
    %111 = arith.addf %109, %110 : vector<4x384xf32>
    %112 = arith.mulf %103, %111 : vector<4x384xf32>
    %113 = vector.extract_strided_slice %82 {offsets = [0, 0], sizes = [8, 384], strides = [1, 1]} : vector<8x408xf32> to vector<8x384xf32>
    %114 = vector.extract_strided_slice %82 {offsets = [0, 1], sizes = [8, 384], strides = [1, 1]} : vector<8x408xf32> to vector<8x384xf32>
    %115 = vector.extract_strided_slice %82 {offsets = [0, 2], sizes = [8, 384], strides = [1, 1]} : vector<8x408xf32> to vector<8x384xf32>
    %116 = tpu.concatenate %113, %114, %115, %95 in 0 : vector<8x384xf32>, vector<8x384xf32>, vector<8x384xf32>, vector<8x384xf32> -> vector<32x384xf32>
    %cst_42 = arith.constant dense<0.000000e+00> : vector<8x384xf32>
    %117 = tpu.matmul %2, %116, %cst_42 {dimension_numbers = #tpu.dot_dimension_numbers<[1], [0], [0], [1], [0, 0, 1, 1], [], []>} : vector<8x32xf32>, vector<32x384xf32>, vector<8x384xf32> -> vector<8x384xf32>
    %118 = vector.broadcast %86 : vector<8x1xf32> to vector<8x384xf32>
    %119 = arith.addf %117, %118 : vector<8x384xf32>
    %120 = vector.extract_strided_slice %119 {offsets = [0, 0], sizes = [4, 384], strides = [1, 1]} : vector<8x384xf32> to vector<4x384xf32>
    %121 = math.tanh %120 : vector<4x384xf32>
    %122 = vector.extract_strided_slice %119 {offsets = [4, 0], sizes = [4, 384], strides = [1, 1]} : vector<8x384xf32> to vector<4x384xf32>
    %cst_43 = arith.constant 5.000000e-01 : f32
    %123 = vector.broadcast %cst_43 : f32 to vector<4x384xf32>
    %124 = arith.mulf %123, %122 : vector<4x384xf32>
    %125 = math.tanh %124 : vector<4x384xf32>
    %cst_44 = arith.constant 5.000000e-01 : f32
    %126 = vector.broadcast %cst_44 : f32 to vector<4x384xf32>
    %127 = arith.mulf %126, %125 : vector<4x384xf32>
    %cst_45 = arith.constant 5.000000e-01 : f32
    %128 = vector.broadcast %cst_45 : f32 to vector<4x384xf32>
    %129 = arith.addf %127, %128 : vector<4x384xf32>
    %130 = arith.mulf %121, %129 : vector<4x384xf32>
    %cst_46 = arith.constant dense<0.000000e+00> : vector<8x384xf32>
    %131 = tpu.matmul %4, %130, %cst_46 {dimension_numbers = #tpu.dot_dimension_numbers<[1], [0], [0], [1], [0, 0, 1, 1], [], []>} : vector<8x4xf32>, vector<4x384xf32>, vector<8x384xf32> -> vector<8x384xf32>
    %132 = vector.broadcast %5 : vector<8x1xf32> to vector<8x384xf32>
    %133 = arith.addf %131, %132 : vector<8x384xf32>
    %134 = vector.extract_strided_slice %82 {offsets = [0, 1], sizes = [4, 384], strides = [1, 1]} : vector<8x408xf32> to vector<4x384xf32>
    %135 = vector.extract_strided_slice %97 {offsets = [0, 0], sizes = [4, 384], strides = [1, 1]} : vector<8x384xf32> to vector<4x384xf32>
    %136 = arith.addf %112, %135 : vector<4x384xf32>
    %c1_47 = arith.constant 1 : index
    %c0_48 = arith.constant 0 : index
    %c0_49 = arith.constant 0 : index
    %137 = vector.load %arg6[%c1_47, %c0_48, %c0_49] : memref<2x12x384xf32, #tpu.memory_space<vmem>>, vector<1x4x384xf32>
    %138 = vector.shape_cast %137 : vector<1x4x384xf32> to vector<4x384xf32>
    %139 = vector.shape_cast %136 : vector<4x384xf32> to vector<1x4x384xf32>
    tpu.vector_store %arg6[%c1_47, %c0_48, %c0_49], %139 {strides = array<i32>} : memref<2x12x384xf32, #tpu.memory_space<vmem>>, vector<1x4x384xf32>,
    %140 = vector.extract_strided_slice %133 {offsets = [0, 0], sizes = [4, 384], strides = [1, 1]} : vector<8x384xf32> to vector<4x384xf32>
    %141 = arith.addf %140, %134 : vector<4x384xf32>
    %c1_50 = arith.constant 1 : index
    %c4_51 = arith.constant 4 : index
    %c0_52 = arith.constant 0 : index
    %142 = vector.load %arg6[%c1_50, %c4_51, %c0_52] : memref<2x12x384xf32, #tpu.memory_space<vmem>>, vector<1x4x384xf32>
    %143 = vector.shape_cast %142 : vector<1x4x384xf32> to vector<4x384xf32>
    %144 = vector.shape_cast %141 : vector<4x384xf32> to vector<1x4x384xf32>
    tpu.vector_store %arg6[%c1_50, %c4_51, %c0_52], %144 {strides = array<i32>} : memref<2x12x384xf32, #tpu.memory_space<vmem>>, vector<1x4x384xf32>,
    %145 = vector.extract_strided_slice %133 {offsets = [4, 0], sizes = [4, 384], strides = [1, 1]} : vector<8x384xf32> to vector<4x384xf32>
    %c1_53 = arith.constant 1 : index
    %c0_54 = arith.constant 0 : index
    %c0_55 = arith.constant 0 : index
    %146 = vector.load %arg3[%c1_53, %c0_54, %c0_55] : memref<2x4x384xf32, #tpu.memory_space<vmem>>, vector<1x4x384xf32>
    %147 = vector.shape_cast %146 : vector<1x4x384xf32> to vector<4x384xf32>
    %148 = arith.addf %145, %147 : vector<4x384xf32>
    %c1_56 = arith.constant 1 : index
    %c8_57 = arith.constant 8 : index
    %c0_58 = arith.constant 0 : index
    %149 = vector.load %arg6[%c1_56, %c8_57, %c0_58] : memref<2x12x384xf32, #tpu.memory_space<vmem>>, vector<1x4x384xf32>
    %150 = vector.shape_cast %149 : vector<1x4x384xf32> to vector<4x384xf32>
    %151 = vector.shape_cast %148 : vector<4x384xf32> to vector<1x4x384xf32>
    tpu.vector_store %arg6[%c1_56, %c8_57, %c0_58], %151 {strides = array<i32>} : memref<2x12x384xf32, #tpu.memory_space<vmem>>, vector<1x4x384xf32>,
    return
  }
  func.func @transform_0(%arg0: i32) -> (i32, i32, i32) {
    %c0_i32 = arith.constant 0 : i32
    %c0_i32_0 = arith.constant 0 : i32
    %c0_i32_1 = arith.constant 0 : i32
    return %arg0, %c0_i32, %c0_i32_0 : i32, i32, i32
  }
  func.func @transform_1(%arg0: i32) -> (i32, i32, i32) {
    %c0_i32 = arith.constant 0 : i32
    %c0_i32_0 = arith.constant 0 : i32
    %c0_i32_1 = arith.constant 0 : i32
    return %arg0, %c0_i32, %c0_i32_0 : i32, i32, i32
  }
  func.func @transform_2(%arg0: i32) -> (i32, i32, i32) {
    %c0_i32 = arith.constant 0 : i32
    %c0_i32_0 = arith.constant 0 : i32
    %c0_i32_1 = arith.constant 0 : i32
    return %arg0, %c0_i32, %c0_i32_0 : i32, i32, i32
  }
  func.func @transform_3(%arg0: i32) -> (i32, i32, i32) {
    %c0_i32 = arith.constant 0 : i32
    %c0_i32_0 = arith.constant 0 : i32
    %c0_i32_1 = arith.constant 0 : i32
    return %arg0, %c0_i32, %c0_i32_0 : i32, i32, i32
  }
  func.func @transform_4(%arg0: i32) -> (i32, i32) {
    %c0_i32 = arith.constant 0 : i32
    %c0_i32_0 = arith.constant 0 : i32
    %c0_i32_1 = arith.constant 0 : i32
    return %c0_i32, %c0_i32_0 : i32, i32
  }
  func.func @transform_5(%arg0: i32) -> (i32, i32, i32) {
    %c0_i32 = arith.constant 0 : i32
    %c0_i32_0 = arith.constant 0 : i32
    %c0_i32_1 = arith.constant 0 : i32
    return %arg0, %c0_i32, %c0_i32_0 : i32, i32, i32
  }
}

</mosaic_0001>

<llo_original>
// kernel: tpu_custom_call.1
$region0: #{tpu_custom_call.1}
  #allocation0 [shape = 'u32[]', space=smem, size = 0x4, offset = 0x4, fixed_abs, tag = 'smem constant byte address 0x4 - core index']
  #allocation1 [shape = 'u32[72,128]{1,0:T(1,128)}', space=vmem, size = 0x9000, scoped, tag = 'internal scratch']
  %s0 = inlined_call_operand.hbm [shape: f32[4,8,456], index: 0, kind: input, shape index: {}]
  %s1 = inlined_call_operand.hbm [shape: f32[4,8,408], index: 1, kind: input, shape index: {}]
  %s2 = inlined_call_operand.hbm [shape: f32[4,4,384], index: 2, kind: input, shape index: {}]
  %s3 = inlined_call_operand.vmem [shape: f32[4,8,2], index: 3, kind: input, shape index: {}]
  %s4 = inlined_call_operand.vmem [shape: f32[8,93], index: 4, kind: input, shape index: {}]
  %s5 = inlined_call_operand.vmem [shape: f32[4,12,384], index: 5, kind: output, shape index: {}]
  %s6 = sld [smem:[#allocation0]]
  $region65: #{tpu_custom_call.1} parent=0
    _
  %s8 = ssub.s32 1, %s6
  %s9 = scalar_select 0, %s8, %s6
  $region1: #{tpu_custom_call.1} parent=0
    #allocation2 [shape = 'u8[65536]{0}', space=vmem, size = 0x10000, scoped, tag = 'input window, operand 0']
    #allocation3 [shape = 's32[2]{0}', space=sflag, size = 0x8, scoped, tag = 'scoped memory for tpu_custom_call.1']
    #allocation4 [shape = 'u8[65536]{0}', space=vmem, size = 0x10000, scoped, tag = 'input window, operand 1']
    #allocation5 [shape = 's32[2]{0}', space=sflag, size = 0x8, scoped, tag = 'scoped memory for tpu_custom_call.1']
    #allocation6 [shape = 'u8[24576]{0}', space=vmem, size = 0x6000, scoped, tag = 'input window, operand 2']
    %10 = vsyncpa [#allocation3], 0
    %s11 = scalar_lea.sflag [#allocation3], 1
    %12 = vsyncpa %s11, 0
    %13 = vsyncpa [#allocation5], 0
    %s14 = scalar_lea.sflag [#allocation5], 1
    %15 = vsyncpa %s14, 0
    loop: start=0, step=1, limit=4
    $region2: #{tpu_custom_call.1} parent=1 // loop_pre_header
      _
    $region3: #{tpu_custom_call.1} parent=1 // loop_header
      %s17 = sphi 0, %s21
      %p18 = scmp.ge.s32.totalorder %s17, 4
      %s27 = sphi 0, %s29
      %s30 = sphi 0, %s27
      %s31 = sphi 0, %s30
      %s47 = sphi 0, %s31
      %s53 = sphi 0, %s55
      %s56 = sphi 0, %s53
      %s57 = sphi 0, %s56
      %s73 = sphi 0, %s57
      %s79 = sphi 0, %s81
      %s82 = sphi 0, %s79
      %s83 = sphi 0, %s82
      %s99 = sphi 0, %s83
      %s105 = sphi 0, %s107
      %s108 = sphi 0, %s105
      %s109 = sphi 0, %s108
      %s125 = sphi 0, %s109
      %s129 = sphi 0, %s129
      %s131 = sphi 0, %s129
      %s132 = sphi 0, %s131
      %s146 = sphi 0, %s132
      %s152 = sphi 0, %s154
      %s155 = sphi 0, %s152
      %s156 = sphi 0, %s155
      %s172 = sphi 0, %s156
    $region4: #{tpu_custom_call.1} parent=1 // loop_header_branch
      %20 = sbr.rel (%p18) target = $region8
    $region5: #{tpu_custom_call.1} parent=1 // loop_body
      %s22 = ssub.s32 %s17, 1
      %s23 = ssub.s32 %s17, 2
      %s24 = sadd.s32 %s17, 1
      %s25 = ssub.s32 %s17, %s24
      %p26 = scmp.eq.s32.totalorder %s25, 0
      %s28 = sadd.s32 %s27, 1
      %s29 = scalar_select %p26, %s27, %s28
      %p32 = pneg %p26
      %p33 = scmp.eq.s32.totalorder %s17, 1
      %p34 = por %p32, %p33
      %p35 = scmp.ne.s32.totalorder %s27, %s30
      %p36 = scmp.eq.s32.totalorder %s17, 0
      %p37 = por %p35, %p36
      %p38 = scmp.ne.s32.totalorder %s27, %s30
      %p39 = scmp.eq.s32.totalorder %s22, 1
      %p40 = por %p38, %p39
      %p41 = scmp.ne.s32.totalorder %s30, %s31
      %p42 = scmp.eq.s32.totalorder %s22, 0
      %p43 = por %p41, %p42
      %p44 = scmp.ne.s32.totalorder %s30, %s31
      %p45 = scmp.eq.s32.totalorder %s23, 1
      %p46 = por %p44, %p45
      %p48 = scmp.ne.s32.totalorder %s31, %s47
      %p49 = scmp.eq.s32.totalorder %s23, 0
      %p50 = por %p48, %p49
      %s51 = ssub.s32 %s17, %s24
      %p52 = scmp.eq.s32.totalorder %s51, 0
      %s54 = sadd.s32 %s53, 1
      %s55 = scalar_select %p52, %s53, %s54
      %p58 = pneg %p52
      %p59 = scmp.eq.s32.totalorder %s17, 1
      %p60 = por %p58, %p59
      %p61 = scmp.ne.s32.totalorder %s53, %s56
      %p62 = scmp.eq.s32.totalorder %s17, 0
      %p63 = por %p61, %p62
      %p64 = scmp.ne.s32.totalorder %s53, %s56
      %p65 = scmp.eq.s32.totalorder %s22, 1
      %p66 = por %p64, %p65
      %p67 = scmp.ne.s32.totalorder %s56, %s57
      %p68 = scmp.eq.s32.totalorder %s22, 0
      %p69 = por %p67, %p68
      %p70 = scmp.ne.s32.totalorder %s56, %s57
      %p71 = scmp.eq.s32.totalorder %s23, 1
      %p72 = por %p70, %p71
      %p74 = scmp.ne.s32.totalorder %s57, %s73
      %p75 = scmp.eq.s32.totalorder %s23, 0
      %p76 = por %p74, %p75
      %s77 = ssub.s32 %s17, %s24
      %p78 = scmp.eq.s32.totalorder %s77, 0
      %s80 = sadd.s32 %s79, 1
      %s81 = scalar_select %p78, %s79, %s80
      %p84 = pneg %p78
      %p85 = scmp.eq.s32.totalorder %s17, 1
      %p86 = por %p84, %p85
      %p87 = scmp.ne.s32.totalorder %s79, %s82
      %p88 = scmp.eq.s32.totalorder %s17, 0
      %p89 = por %p87, %p88
      %p90 = scmp.ne.s32.totalorder %s79, %s82
      %p91 = scmp.eq.s32.totalorder %s22, 1
      %p92 = por %p90, %p91
      %p93 = scmp.ne.s32.totalorder %s82, %s83
      %p94 = scmp.eq.s32.totalorder %s22, 0
      %p95 = por %p93, %p94
      %p96 = scmp.ne.s32.totalorder %s82, %s83
      %p97 = scmp.eq.s32.totalorder %s23, 1
      %p98 = por %p96, %p97
      %p100 = scmp.ne.s32.totalorder %s83, %s99
      %p101 = scmp.eq.s32.totalorder %s23, 0
      %p102 = por %p100, %p101
      %s103 = ssub.s32 %s17, %s24
      %p104 = scmp.eq.s32.totalorder %s103, 0
      %s106 = sadd.s32 %s105, 1
      %s107 = scalar_select %p104, %s105, %s106
      %p110 = pneg %p104
      %p111 = scmp.eq.s32.totalorder %s17, 1
      %p112 = por %p110, %p111
      %p113 = scmp.ne.s32.totalorder %s105, %s108
      %p114 = scmp.eq.s32.totalorder %s17, 0
      %p115 = por %p113, %p114
      %p116 = scmp.ne.s32.totalorder %s105, %s108
      %p117 = scmp.eq.s32.totalorder %s22, 1
      %p118 = por %p116, %p117
      %p119 = scmp.ne.s32.totalorder %s108, %s109
      %p120 = scmp.eq.s32.totalorder %s22, 0
      %p121 = por %p119, %p120
      %p122 = scmp.ne.s32.totalorder %s108, %s109
      %p123 = scmp.eq.s32.totalorder %s23, 1
      %p124 = por %p122, %p123
      %p126 = scmp.ne.s32.totalorder %s109, %s125
      %p127 = scmp.eq.s32.totalorder %s23, 0
      %p128 = por %p126, %p127
      %s130 = sadd.s32 %s129, 1
      %p133 = scmp.eq.s32.totalorder %s17, 1
      %p134 = scmp.ne.s32.totalorder %s129, %s131
      %p135 = scmp.eq.s32.totalorder %s17, 0
      %p136 = por %p134, %p135
      %p137 = scmp.ne.s32.totalorder %s129, %s131
      %p138 = scmp.eq.s32.totalorder %s22, 1
      %p139 = por %p137, %p138
      %p140 = scmp.ne.s32.totalorder %s131, %s132
      %p141 = scmp.eq.s32.totalorder %s22, 0
      %p142 = por %p140, %p141
      %p143 = scmp.ne.s32.totalorder %s131, %s132
      %p144 = scmp.eq.s32.totalorder %s23, 1
      %p145 = por %p143, %p144
      %p147 = scmp.ne.s32.totalorder %s132, %s146
      %p148 = scmp.eq.s32.totalorder %s23, 0
      %p149 = por %p147, %p148
      %s150 = ssub.s32 %s17, %s24
      %p151 = scmp.eq.s32.totalorder %s150, 0
      %s153 = sadd.s32 %s152, 1
      %s154 = scalar_select %p151, %s152, %s153
      %p157 = pneg %p151
      %p158 = scmp.eq.s32.totalorder %s17, 1
      %p159 = por %p157, %p158
      %p160 = scmp.ne.s32.totalorder %s152, %s155
      %p161 = scmp.eq.s32.totalorder %s17, 0
      %p162 = por %p160, %p161
      %p163 = scmp.ne.s32.totalorder %s152, %s155
      %p164 = scmp.eq.s32.totalorder %s22, 1
      %p165 = por %p163, %p164
      %p166 = scmp.ne.s32.totalorder %s155, %s156
      %p167 = scmp.eq.s32.totalorder %s22, 0
      %p168 = por %p166, %p167
      %p169 = scmp.ne.s32.totalorder %s155, %s156
      %p170 = scmp.eq.s32.totalorder %s23, 1
      %p171 = por %p169, %p170
      %p173 = scmp.ne.s32.totalorder %s156, %s172
      %p174 = scmp.eq.s32.totalorder %s23, 0
      %p175 = por %p173, %p174
      %p176 = scmp.le.s32.totalorder 1, %s17
      %p177 = scmp.lt.s32.totalorder %s17, 3
      %p178 = pnand %p176, %p177
      %p179 = pneg %p178
      // Predicated region
      $region9: #{tpu_custom_call.1} parent=5 // pred_check
        _
      $region10: #{tpu_custom_call.1} parent=5 // pred_check_branch
        %181 = sbr.rel (%p178) target = $region12
      $region11: #{tpu_custom_call.1} parent=5 // pred_region
        %s182 = ssub.s32 %s17, 1
        // Predicated region
        $region13: #{tpu_custom_call.1} parent=11 // pred_check
          %p183 = pneg %p142
        $region14: #{tpu_custom_call.1} parent=11 // pred_check_branch
          %185 = sbr.rel (%p183) target = $region16
        $region15: #{tpu_custom_call.1} parent=11 // pred_region
          _
        $region16: #{tpu_custom_call.1} parent=11 // pred_fallthru
          _
      $region12: #{tpu_custom_call.1} parent=5 // pred_fallthru
        _
      %p186 = scmp.lt.s32.totalorder %s17, 2
      // Predicated region
      $region17: #{tpu_custom_call.1} parent=5 // pred_check
        %p187 = pneg %p186
      $region18: #{tpu_custom_call.1} parent=5 // pred_check_branch
        %189 = sbr.rel (%p187) target = $region20
      $region19: #{tpu_custom_call.1} parent=5 // pred_region
        // Predicated region
        $region21: #{tpu_custom_call.1} parent=19 // pred_check
          %p190 = pneg %p37
        $region22: #{tpu_custom_call.1} parent=19 // pred_check_branch
          %192 = sbr.rel (%p190) target = $region24
        $region23: #{tpu_custom_call.1} parent=19 // pred_region
          %s193 = sand.u32 %s27, 1
          %s194 = scalar_lea.sflag [#allocation3], %s193
          %s195 = sand.u32 %s27, 1
          %s196 = smul.addr %s195, 64
          %s197 = scalar_lea.vmem [#allocation2], %s196
          %s198 = smul.u32 2, %s17
          %200 = vsyncadd %s194, 0
          %s201 = smul.addr %s198, 4
          %s202 = smul.addr %s201, 8
          %s203 = scalar_lea.hbm %s0, %s202
          %s204 = sshll.u32 %s203, 4
          %s205 = int_to_ptr.hbm [resolvable:$true] %s204
          %s206 = sshll.u32 %s197, 4
          %s207 = int_to_ptr.vmem [resolvable:$true] %s206
          %212 = dma.hbm_to_vmem [thread:$0]  %s205, 1024, %s207, %s194, 512, 512, 32
        $region24: #{tpu_custom_call.1} parent=19 // pred_fallthru
          _
        // Predicated region
        $region25: #{tpu_custom_call.1} parent=19 // pred_check
          %p213 = pneg %p63
        $region26: #{tpu_custom_call.1} parent=19 // pred_check_branch
          %215 = sbr.rel (%p213) target = $region28
        $region27: #{tpu_custom_call.1} parent=19 // pred_region
          %s216 = sand.u32 %s17, 1
          %s217 = scalar_lea.sflag [#allocation5], %s216
          %s218 = sand.u32 %s53, 1
          %s219 = smul.addr %s218, 64
          %s220 = scalar_lea.vmem [#allocation4], %s219
          %s221 = smul.u32 2, %s17
          %223 = vsyncadd %s217, 0
          %s224 = smul.addr %s221, 4
          %s225 = smul.addr %s224, 8
          %s226 = scalar_lea.hbm %s1, %s225
          %s227 = sshll.u32 %s226, 4
          %s228 = int_to_ptr.hbm [resolvable:$true] %s227
          %s229 = sshll.u32 %s220, 4
          %s230 = int_to_ptr.vmem [resolvable:$true] %s229
          %235 = dma.hbm_to_vmem [thread:$0]  %s228, 1024, %s230, %s217, 512, 512, 32
        $region28: #{tpu_custom_call.1} parent=19 // pred_fallthru
          _
        // Predicated region
        $region29: #{tpu_custom_call.1} parent=19 // pred_check
          %p236 = pneg %p89
        $region30: #{tpu_custom_call.1} parent=19 // pred_check_branch
          %238 = sbr.rel (%p236) target = $region32
        $region31: #{tpu_custom_call.1} parent=19 // pred_region
          %s239 = sand.u32 %s17, 1
          %s240 = scalar_lea.sflag [#allocation5], %s239
          %s241 = sand.u32 %s79, 1
          %s242 = smul.addr %s241, 24
          %s243 = scalar_lea.vmem [#allocation6], %s242
          %s244 = smul.u32 2, %s17
          %246 = vsyncadd %s240, 0
          %s247 = smul.addr %s244, 3
          %s248 = smul.addr %s247, 4
          %s249 = scalar_lea.hbm %s2, %s248
          %s250 = sshll.u32 %s249, 4
          %s251 = int_to_ptr.hbm [resolvable:$true] %s250
          %s252 = sshll.u32 %s243, 4
          %s253 = int_to_ptr.vmem [resolvable:$true] %s252
          %258 = dma.hbm_to_vmem [thread:$0]  %s251, 384, %s253, %s240, 192, 192, 12
        $region32: #{tpu_custom_call.1} parent=19 // pred_fallthru
          _
        // Predicated region
        $region33: #{tpu_custom_call.1} parent=19 // pred_check
          %p259 = pneg %p115
        $region34: #{tpu_custom_call.1} parent=19 // pred_check_branch
          %261 = sbr.rel (%p259) target = $region36
        $region35: #{tpu_custom_call.1} parent=19 // pred_region
          %s262 = smul.u32 2, %s17
          %p263 = scmp.lt.s32.totalorder %s262, 3
          %s264 = scalar_select %p263, %s262, 3
          %s265 = smul.addr %s264, 8
          %s266 = scalar_lea.vmem %s3, %s265
          %s267 = smul.u32 2, %s17
        $region36: #{tpu_custom_call.1} parent=19 // pred_fallthru
          _
      $region20: #{tpu_custom_call.1} parent=5 // pred_fallthru
        _
      %p268 = scmp.le.s32.totalorder 1, %s17
      %p269 = scmp.lt.s32.totalorder %s17, 3
      %p270 = pnand %p268, %p269
      %p271 = pneg %p270
      // Predicated region
      $region37: #{tpu_custom_call.1} parent=5 // pred_check
        _
      $region38: #{tpu_custom_call.1} parent=5 // pred_check_branch
        %273 = sbr.rel (%p270) target = $region40
      $region39: #{tpu_custom_call.1} parent=5 // pred_region
        %s274 = ssub.s32 %s17, 1
        %s275 = sand.u32 %s30, 1
        %s276 = scalar_lea.sflag [#allocation3], %s275
        %s277 = sand.u32 %s30, 1
        %s278 = smul.addr %s277, 64
        %s279 = scalar_lea.vmem [#allocation2], %s278
        // Predicated region
        $region41: #{tpu_custom_call.1} parent=39 // pred_check
          %p280 = pneg %p43
        $region42: #{tpu_custom_call.1} parent=39 // pred_check_branch
          %282 = sbr.rel (%p280) target = $region44
        $region43: #{tpu_custom_call.1} parent=39 // pred_region
          %284 = dma.done %s276, 1024
        $region44: #{tpu_custom_call.1} parent=39 // pred_fallthru
          _
        %s285 = sand.u32 %s22, 1
        %s286 = scalar_lea.sflag [#allocation5], %s285
        %s287 = sand.u32 %s56, 1
        %s288 = smul.addr %s287, 64
        %s289 = scalar_lea.vmem [#allocation4], %s288
        // Predicated region
        $region45: #{tpu_custom_call.1} parent=39 // pred_check
          %p290 = pneg %p69
        $region46: #{tpu_custom_call.1} parent=39 // pred_check_branch
          %292 = sbr.rel (%p290) target = $region48
        $region47: #{tpu_custom_call.1} parent=39 // pred_region
          %294 = dma.done %s286, 1024
        $region48: #{tpu_custom_call.1} parent=39 // pred_fallthru
          _
        %s295 = sand.u32 %s22, 1
        %s296 = scalar_lea.sflag [#allocation5], %s295
        %s297 = sand.u32 %s82, 1
        %s298 = smul.addr %s297, 24
        %s299 = scalar_lea.vmem [#allocation6], %s298
        // Predicated region
        $region49: #{tpu_custom_call.1} parent=39 // pred_check
          %p300 = pneg %p95
        $region50: #{tpu_custom_call.1} parent=39 // pred_check_branch
          %302 = sbr.rel (%p300) target = $region52
        $region51: #{tpu_custom_call.1} parent=39 // pred_region
          %304 = dma.done %s296, 384
        $region52: #{tpu_custom_call.1} parent=39 // pred_fallthru
          _
        %s305 = sand.u32 %s30, 1
        %s306 = scalar_lea.sflag [#allocation3], %s305
        %s307 = sand.u32 %s30, 1
        %s308 = smul.addr %s307, 64
        %s309 = scalar_lea.vmem [#allocation2], %s308
        %p310 = pneg %p43
        %p311 = pneg %p40
        %s312 = sand.u32 %s22, 1
        %s313 = scalar_lea.sflag [#allocation5], %s312
        %s314 = sand.u32 %s56, 1
        %s315 = smul.addr %s314, 64
        %s316 = scalar_lea.vmem [#allocation4], %s315
        %p317 = pneg %p69
        %p318 = pneg %p66
        %s319 = sand.u32 %s22, 1
        %s320 = scalar_lea.sflag [#allocation5], %s319
        %s321 = sand.u32 %s82, 1
        %s322 = smul.addr %s321, 24
        %s323 = scalar_lea.vmem [#allocation6], %s322
        %p324 = pneg %p95
        %p325 = pneg %p92
        %s326 = smul.u32 2, %s22
        %p327 = scmp.lt.s32.totalorder %s326, 3
        %s328 = scalar_select %p327, %s326, 3
        %s329 = smul.addr %s328, 8
        %s330 = scalar_lea.vmem %s3, %s329
        %p331 = pneg %p121
        %p332 = pneg %p118
        %p333 = pneg %p142
        %p334 = pneg %p139
        %p335 = pneg %p168
        %p336 = pneg %p165
        %s337 = smul.u32 2, %s22
        %p338 = scmp.lt.s32.totalorder %s337, 3
        %s339 = scalar_select %p338, %s337, 3
        %s340 = smul.addr %s339, 6
        %s341 = smul.addr %s340, 8
        %s342 = scalar_lea.vmem %s5, %s341
        %s343 = smul.u32 2, %s22
        %s344 = smul.u32 2, %s22
        %s345 = smul.u32 2, %s22
        %s346 = smul.u32 2, %s22
        %p347 = scmp.lt.s32.totalorder %s346, 3
        %s348 = scalar_select %p347, %s346, 3
        %s349 = smul.addr %s348, 8
        %s350 = scalar_lea.vmem %s3, %s349
        %s351 = smul.u32 2, %s22
        %s352 = smul.u32 2, %s22
        %p353 = scmp.lt.s32.totalorder %s352, 3
        %s354 = scalar_select %p353, %s352, 3
        %s355 = smul.addr %s354, 6
        %s356 = smul.addr %s355, 8
        %s357 = scalar_lea.vmem %s5, %s356
        %s358 = smul.u32 2, %s22
        %v359 = vld [vmem:[%s4] sm:$0xff]
        %v360 = vld [vmem:[%s279] sm:$0xff]
        %v361 = vld [vmem:[%s279 + $0x8] sm:$0xff]
        %v362 = vld [vmem:[%s279 + $0x10] sm:$0xff]
        %v363 = vld [vmem:[%s279 + $0x18] sm:$0xff]
        %v364 = vld [vmem:[%s289] sm:$0xff]
        %v365 = vld [vmem:[%s289 + $0x8] sm:$0xff]
        %v366 = vld [vmem:[%s289 + $0x10] sm:$0xff]
        %v367 = vld [vmem:[%s289 + $0x18] sm:$0xff]
        %v368 = vld [vmem:[%s350] sm:$0xff]
        %373 = vrot.lane.b32.xlu0 %v360, 127
        %v374 = vpop.permute.xlu0 %373
        %375 = vrot.lane.b32.xlu0 %v361, 127
        %v376 = vpop.permute.xlu0 %375
        %377 = vrot.lane.b32.xlu0 %v362, 127
        %v378 = vpop.permute.xlu0 %377
        %379 = vrot.lane.b32.xlu0 %v363, 127
        %v380 = vpop.permute.xlu0 %379
        %vm381 = vcmask 1039360
        %v382 = vsel %vm381, %v374, %v376
        %v383 = vsel %vm381, %v376, %v378
        %v384 = vsel %vm381, %v378, %v380
        %389 = vrot.lane.b32.xlu0 %v360, 126
        %v390 = vpop.permute.xlu0 %389
        %391 = vrot.lane.b32.xlu0 %v361, 126
        %v392 = vpop.permute.xlu0 %391
        %393 = vrot.lane.b32.xlu0 %v362, 126
        %v394 = vpop.permute.xlu0 %393
        %395 = vrot.lane.b32.xlu0 %v363, 126
        %v396 = vpop.permute.xlu0 %395
        %vm397 = vcmask 1031168
        %v398 = vsel %vm397, %v390, %v392
        %v399 = vsel %vm397, %v392, %v394
        %v400 = vsel %vm397, %v394, %v396
        %405 = vrot.lane.b32.xlu0 %v360, 104
        %v406 = vpop.permute.xlu0 %405
        %407 = vrot.lane.b32.xlu0 %v361, 104
        %v408 = vpop.permute.xlu0 %407
        %409 = vrot.lane.b32.xlu0 %v362, 104
        %v410 = vpop.permute.xlu0 %409
        %411 = vrot.lane.b32.xlu0 %v363, 104
        %v412 = vpop.permute.xlu0 %411
        %vm413 = vcmask 850944
        %v414 = vsel %vm413, %v406, %v408
        %v415 = vsel %vm413, %v408, %v410
        %v416 = vsel %vm413, %v410, %v412
        %421 = vrot.lane.b32.xlu0 %v360, 103
        %v422 = vpop.permute.xlu0 %421
        %423 = vrot.lane.b32.xlu0 %v361, 103
        %v424 = vpop.permute.xlu0 %423
        %425 = vrot.lane.b32.xlu0 %v362, 103
        %v426 = vpop.permute.xlu0 %425
        %427 = vrot.lane.b32.xlu0 %v363, 103
        %v428 = vpop.permute.xlu0 %427
        %vm429 = vcmask 842752
        %v430 = vsel %vm429, %v422, %v424
        %v431 = vsel %vm429, %v424, %v426
        %v432 = vsel %vm429, %v426, %v428
        %437 = vrot.lane.b32.xlu0 %v360, 102
        %v438 = vpop.permute.xlu0 %437
        %439 = vrot.lane.b32.xlu0 %v361, 102
        %v440 = vpop.permute.xlu0 %439
        %441 = vrot.lane.b32.xlu0 %v362, 102
        %v442 = vpop.permute.xlu0 %441
        %443 = vrot.lane.b32.xlu0 %v363, 102
        %v444 = vpop.permute.xlu0 %443
        %vm445 = vcmask 834560
        %v446 = vsel %vm445, %v438, %v440
        %v447 = vsel %vm445, %v440, %v442
        %v448 = vsel %vm445, %v442, %v444
        %vm453 = vcmask 392192
        %v455 = vsel %vm453, %v359, 0
        %457 = vmatpush.msra.mxu0 0.0
        %458 = vmatpush.msra.mxu0 0.0
        %459 = vmatpush.msra.mxu0 0.0
        %460 = vmatpush.msra.mxu0 0.0
        %461 = vmatpush.msra.mxu0 0.0
        %462 = vmatpush.msra.mxu0 0.0
        %463 = vmatpush.msra.mxu0 0.0
        %464 = vmatpush.msra.mxu0 0.0
        %465 = vmatpush.msra.mxu0 0.0
        %466 = vmatpush.msra.mxu0 0.0
        %467 = vmatpush.msra.mxu0 %v446
        %468 = vmatpush.msra.mxu0 %v430
        %469 = vmatpush.msra.mxu0 %v414
        %470 = vmatpush.msra.mxu0 %v398
        %471 = vmatpush.msra.mxu0 %v382
        %472 = vmatpush.msra.mxu0 %v360
        %473 = vmatmul.f32.gmra.mxu0 %v455
        %v474 = vpop.f32.mrf.mxu0
        %v475 = vadd.f32 0.0, %v474
        %476 = vdwg.mxu0
        %477 = vmatpush.msra.mxu0 0.0
        %478 = vmatpush.msra.mxu0 0.0
        %479 = vmatpush.msra.mxu0 0.0
        %480 = vmatpush.msra.mxu0 0.0
        %481 = vmatpush.msra.mxu0 0.0
        %482 = vmatpush.msra.mxu0 0.0
        %483 = vmatpush.msra.mxu0 0.0
        %484 = vmatpush.msra.mxu0 0.0
        %485 = vmatpush.msra.mxu0 0.0
        %486 = vmatpush.msra.mxu0 0.0
        %487 = vmatpush.msra.mxu0 %v447
        %488 = vmatpush.msra.mxu0 %v431
        %489 = vmatpush.msra.mxu0 %v415
        %490 = vmatpush.msra.mxu0 %v399
        %491 = vmatpush.msra.mxu0 %v383
        %492 = vmatpush.msra.mxu0 %v361
        %493 = vmatmul.f32.gmra.mxu0 %v455
        %v494 = vpop.f32.mrf.mxu0
        %v495 = vadd.f32 0.0, %v494
        %496 = vdwg.mxu0
        %497 = vmatpush.msra.mxu0 0.0
        %498 = vmatpush.msra.mxu0 0.0
        %499 = vmatpush.msra.mxu0 0.0
        %500 = vmatpush.msra.mxu0 0.0
        %501 = vmatpush.msra.mxu0 0.0
        %502 = vmatpush.msra.mxu0 0.0
        %503 = vmatpush.msra.mxu0 0.0
        %504 = vmatpush.msra.mxu0 0.0
        %505 = vmatpush.msra.mxu0 0.0
        %506 = vmatpush.msra.mxu0 0.0
        %507 = vmatpush.msra.mxu0 %v448
        %508 = vmatpush.msra.mxu0 %v432
        %509 = vmatpush.msra.mxu0 %v416
        %510 = vmatpush.msra.mxu0 %v400
        %511 = vmatpush.msra.mxu0 %v384
        %512 = vmatpush.msra.mxu0 %v362
        %513 = vmatmul.f32.gmra.mxu0 %v455
        %v514 = vpop.f32.mrf.mxu0
        %v515 = vadd.f32 0.0, %v514
        %516 = vdwg.mxu0
        %517 = vmatpush.msra.mxu0 0.0
        %518 = vmatpush.msra.mxu0 0.0
        %519 = vmatpush.msra.mxu0 0.0
        %520 = vmatpush.msra.mxu0 0.0
        %521 = vmatpush.msra.mxu0 0.0
        %522 = vmatpush.msra.mxu0 0.0
        %523 = vmatpush.msra.mxu0 0.0
        %524 = vmatpush.msra.mxu0 0.0
        %525 = vmatpush.msra.mxu0 0.0
        %526 = vmatpush.msra.mxu0 0.0
        %527 = vmatpush.msra.mxu0 %v444
        %528 = vmatpush.msra.mxu0 %v428
        %529 = vmatpush.msra.mxu0 %v412
        %530 = vmatpush.msra.mxu0 %v396
        %531 = vmatpush.msra.mxu0 %v380
        %532 = vmatpush.msra.mxu0 %v363
        %533 = vmatmul.f32.gmra.mxu0 %v455
        %v534 = vpop.f32.mrf.mxu0
        %v535 = vadd.f32 0.0, %v534
        %536 = vdwg.mxu0
        %537 = vrot.lane.b32.xlu0 %v359, 48
        %v538 = vpop.permute.xlu0 %537
        %539 = vrot.lane.b32.xlu0 %v360, 79
        %v540 = vpop.permute.xlu0 %539
        %541 = vrot.lane.b32.xlu0 %v361, 79
        %v542 = vpop.permute.xlu0 %541
        %543 = vrot.lane.b32.xlu0 %v362, 79
        %v544 = vpop.permute.xlu0 %543
        %545 = vrot.lane.b32.xlu0 %v363, 79
        %v546 = vpop.permute.xlu0 %545
        %vm547 = vcmask 646144
        %v548 = vsel %vm547, %v540, %v542
        %v549 = vsel %vm547, %v542, %v544
        %v550 = vsel %vm547, %v544, %v546
        %vm554 = vcmask 64512
        %v555 = vsel %vm554, %v538, 0
        %557 = vmatpush.msra.mxu0 0.0
        %558 = vmatpush.msra.mxu0 0.0
        %559 = vmatpush.msra.mxu0 0.0
        %560 = vmatpush.msra.mxu0 0.0
        %561 = vmatpush.msra.mxu0 0.0
        %562 = vmatpush.msra.mxu0 0.0
        %563 = vmatpush.msra.mxu0 0.0
        %564 = vmatpush.msra.mxu0 0.0
        %565 = vmatpush.msra.mxu0 0.0
        %566 = vmatpush.msra.mxu0 0.0
        %567 = vmatpush.msra.mxu0 0.0
        %568 = vmatpush.msra.mxu0 0.0
        %569 = vmatpush.msra.mxu0 0.0
        %570 = vmatpush.msra.mxu0 0.0
        %571 = vmatpush.msra.mxu0 0.0
        %572 = vmatpush.msra.mxu0 %v548
        %573 = vmatmul.f32.gmra.mxu0 %v555
        %v574 = vpop.f32.mrf.mxu0
        %v575 = vadd.f32 0.0, %v574
        %576 = vdwg.mxu0
        %577 = vmatpush.msra.mxu0 0.0
        %578 = vmatpush.msra.mxu0 0.0
        %579 = vmatpush.msra.mxu0 0.0
        %580 = vmatpush.msra.mxu0 0.0
        %581 = vmatpush.msra.mxu0 0.0
        %582 = vmatpush.msra.mxu0 0.0
        %583 = vmatpush.msra.mxu0 0.0
        %584 = vmatpush.msra.mxu0 0.0
        %585 = vmatpush.msra.mxu0 0.0
        %586 = vmatpush.msra.mxu0 0.0
        %587 = vmatpush.msra.mxu0 0.0
        %588 = vmatpush.msra.mxu0 0.0
        %589 = vmatpush.msra.mxu0 0.0
        %590 = vmatpush.msra.mxu0 0.0
        %591 = vmatpush.msra.mxu0 0.0
        %592 = vmatpush.msra.mxu0 %v549
        %593 = vmatmul.f32.gmra.mxu0 %v555
        %v594 = vpop.f32.mrf.mxu0
        %v595 = vadd.f32 0.0, %v594
        %596 = vdwg.mxu0
        %597 = vmatpush.msra.mxu0 0.0
        %598 = vmatpush.msra.mxu0 0.0
        %599 = vmatpush.msra.mxu0 0.0
        %600 = vmatpush.msra.mxu0 0.0
        %601 = vmatpush.msra.mxu0 0.0
        %602 = vmatpush.msra.mxu0 0.0
        %603 = vmatpush.msra.mxu0 0.0
        %604 = vmatpush.msra.mxu0 0.0
        %605 = vmatpush.msra.mxu0 0.0
        %606 = vmatpush.msra.mxu0 0.0
        %607 = vmatpush.msra.mxu0 0.0
        %608 = vmatpush.msra.mxu0 0.0
        %609 = vmatpush.msra.mxu0 0.0
        %610 = vmatpush.msra.mxu0 0.0
        %611 = vmatpush.msra.mxu0 0.0
        %612 = vmatpush.msra.mxu0 %v550
        %613 = vmatmul.f32.gmra.mxu0 %v555
        %v614 = vpop.f32.mrf.mxu0
        %v615 = vadd.f32 0.0, %v614
        %616 = vdwg.mxu0
        %620 = vrot.lane.b32.xlu0 %v575, 24
        %v621 = vpop.permute.xlu0 %620
        %622 = vrot.lane.b32.xlu0 %v595, 24
        %v623 = vpop.permute.xlu0 %622
        %624 = vrot.lane.b32.xlu0 %v615, 24
        %v625 = vpop.permute.xlu0 %624
        %vm626 = vcmask 195584
        %v627 = vsel %vm626, %v621, %v623
        %v628 = vsel %vm626, %v623, %v625
        %v633 = vadd.f32 %v475, %v621
        %v634 = vadd.f32 %v495, %v627
        %v635 = vadd.f32 %v515, %v628
        %v636 = vadd.f32 %v535, %v625
        %638 = vset.pattern.permute.xlu0 0
        %639 = vperm.xlu0 %638, %v368
        %v640 = vpop.permute.xlu0 %639
        %v642 = vadd.f32 %v633, %v640
        %v643 = vadd.f32 %v634, %v640
        %v644 = vadd.f32 %v635, %v640
        %v645 = vadd.f32 %v636, %v640
        %v646 = vtanh.pop %v642
        %v647 = vtanh.pop %v643
        %v648 = vtanh.pop %v644
        %v649 = vtanh.pop %v645
        %v650 = vmul.f32 %v642, 0.5
        %v651 = vmul.f32 %v643, 0.5
        %v652 = vmul.f32 %v644, 0.5
        %v653 = vmul.f32 %v645, 0.5
        %v654 = vtanh.pop %v650
        %v655 = vtanh.pop %v651
        %v656 = vtanh.pop %v652
        %v657 = vtanh.pop %v653
        %v658 = vmul.f32 %v654, 0.5
        %v659 = vmul.f32 %v655, 0.5
        %v660 = vmul.f32 %v656, 0.5
        %v661 = vmul.f32 %v657, 0.5
        %v662 = vadd.f32 %v658, 0.5
        %v663 = vadd.f32 %v659, 0.5
        %v664 = vadd.f32 %v660, 0.5
        %v665 = vadd.f32 %v661, 0.5
        %v670 = vrot.slane %v662, 4
        %v671 = vrot.slane %v663, 4
        %v672 = vrot.slane %v664, 4
        %v673 = vrot.slane %v665, 4
        %v678 = vmul.f32 %v646, %v670
        %v679 = vmul.f32 %v647, %v671
        %v680 = vmul.f32 %v648, %v672
        %v681 = vmul.f32 %v649, %v673
        %686 = vrot.lane.b32.xlu0 %v364, 127
        %v687 = vpop.permute.xlu0 %686
        %688 = vrot.lane.b32.xlu0 %v365, 127
        %v689 = vpop.permute.xlu0 %688
        %690 = vrot.lane.b32.xlu0 %v366, 127
        %v691 = vpop.permute.xlu0 %690
        %692 = vrot.lane.b32.xlu0 %v367, 127
        %v693 = vpop.permute.xlu0 %692
        %v694 = vsel %vm381, %v687, %v689
        %v695 = vsel %vm381, %v689, %v691
        %v696 = vsel %vm381, %v691, %v693
        %700 = vrot.lane.b32.xlu0 %v364, 126
        %v701 = vpop.permute.xlu0 %700
        %702 = vrot.lane.b32.xlu0 %v365, 126
        %v703 = vpop.permute.xlu0 %702
        %704 = vrot.lane.b32.xlu0 %v366, 126
        %v705 = vpop.permute.xlu0 %704
        %706 = vrot.lane.b32.xlu0 %v367, 126
        %v707 = vpop.permute.xlu0 %706
        %v708 = vsel %vm397, %v701, %v703
        %v709 = vsel %vm397, %v703, %v705
        %v710 = vsel %vm397, %v705, %v707
        %714 = vset.pattern.permute.xlu0 1
        %715 = vperm.xlu0 %714, %v368
        %v716 = vpop.permute.xlu0 %715
        %718 = vrot.lane.b32.xlu0 %v359, 80
        %v719 = vpop.permute.xlu0 %718
        %vm720 = vcmask 261120
        %v721 = vsel %vm720, %v719, 0
        %723 = vmatpush.msra.mxu0 0.0
        %724 = vmatpush.msra.mxu0 0.0
        %725 = vmatpush.msra.mxu0 0.0
        %726 = vmatpush.msra.mxu0 0.0
        %727 = vmatpush.msra.mxu0 0.0
        %728 = vmatpush.msra.mxu0 0.0
        %729 = vmatpush.msra.mxu0 0.0
        %730 = vmatpush.msra.mxu0 0.0
        %731 = vmatpush.msra.mxu0 0.0
        %732 = vmatpush.msra.mxu0 0.0
        %733 = vmatpush.msra.mxu0 0.0
        %734 = vmatpush.msra.mxu0 0.0
        %735 = vmatpush.msra.mxu0 %v475
        %736 = vmatpush.msra.mxu0 %v708
        %737 = vmatpush.msra.mxu0 %v694
        %738 = vmatpush.msra.mxu0 %v364
        %739 = vmatmul.f32.gmra.mxu0 %v721
        %v740 = vpop.f32.mrf.mxu0
        %v741 = vadd.f32 %v716, %v740
        %742 = vdwg.mxu0
        %743 = vmatpush.msra.mxu0 0.0
        %744 = vmatpush.msra.mxu0 0.0
        %745 = vmatpush.msra.mxu0 0.0
        %746 = vmatpush.msra.mxu0 0.0
        %747 = vmatpush.msra.mxu0 0.0
        %748 = vmatpush.msra.mxu0 0.0
        %749 = vmatpush.msra.mxu0 0.0
        %750 = vmatpush.msra.mxu0 0.0
        %751 = vmatpush.msra.mxu0 0.0
        %752 = vmatpush.msra.mxu0 0.0
        %753 = vmatpush.msra.mxu0 0.0
        %754 = vmatpush.msra.mxu0 0.0
        %755 = vmatpush.msra.mxu0 %v495
        %756 = vmatpush.msra.mxu0 %v709
        %757 = vmatpush.msra.mxu0 %v695
        %758 = vmatpush.msra.mxu0 %v365
        %759 = vmatmul.f32.gmra.mxu0 %v721
        %v760 = vpop.f32.mrf.mxu0
        %v761 = vadd.f32 %v716, %v760
        %762 = vdwg.mxu0
        %763 = vmatpush.msra.mxu0 0.0
        %764 = vmatpush.msra.mxu0 0.0
        %765 = vmatpush.msra.mxu0 0.0
        %766 = vmatpush.msra.mxu0 0.0
        %767 = vmatpush.msra.mxu0 0.0
        %768 = vmatpush.msra.mxu0 0.0
        %769 = vmatpush.msra.mxu0 0.0
        %770 = vmatpush.msra.mxu0 0.0
        %771 = vmatpush.msra.mxu0 0.0
        %772 = vmatpush.msra.mxu0 0.0
        %773 = vmatpush.msra.mxu0 0.0
        %774 = vmatpush.msra.mxu0 0.0
        %775 = vmatpush.msra.mxu0 %v515
        %776 = vmatpush.msra.mxu0 %v710
        %777 = vmatpush.msra.mxu0 %v696
        %778 = vmatpush.msra.mxu0 %v366
        %779 = vmatmul.f32.gmra.mxu0 %v721
        %v780 = vpop.f32.mrf.mxu0
        %v781 = vadd.f32 %v716, %v780
        %782 = vdwg.mxu0
        %v783 = vtanh.pop %v741
        %v784 = vtanh.pop %v761
        %v785 = vtanh.pop %v781
        %v786 = vmul.f32 %v741, 0.5
        %v787 = vmul.f32 %v761, 0.5
        %v788 = vmul.f32 %v781, 0.5
        %v789 = vtanh.pop %v786
        %v790 = vtanh.pop %v787
        %v791 = vtanh.pop %v788
        %v792 = vmul.f32 %v789, 0.5
        %v793 = vmul.f32 %v790, 0.5
        %v794 = vmul.f32 %v791, 0.5
        %v795 = vadd.f32 %v792, 0.5
        %v796 = vadd.f32 %v793, 0.5
        %v797 = vadd.f32 %v794, 0.5
        %v801 = vrot.slane %v795, 4
        %v802 = vrot.slane %v796, 4
        %v803 = vrot.slane %v797, 4
        %v807 = vmul.f32 %v783, %v801
        %v808 = vmul.f32 %v784, %v802
        %v809 = vmul.f32 %v785, %v803
        %810 = vset.pattern.permute.xlu0 92
        %811 = vperm.xlu0 %810, %v359
        %v812 = vpop.permute.xlu0 %811
        %814 = vrot.lane.b32.xlu0 %v359, 40
        %v815 = vpop.permute.xlu0 %814
        %vm816 = vcmask 31744
        %v817 = vsel %vm816, %v815, 0
        %vm819 = vcmask 1043456
        %v821 = vsel %vm819, %v807, 0
        %v824 = vsel %vm819, %v808, 0
        %v827 = vsel %vm819, %v809, 0
        %829 = vmatpush.msra.mxu0 0.0
        %830 = vmatpush.msra.mxu0 0.0
        %831 = vmatpush.msra.mxu0 0.0
        %832 = vmatpush.msra.mxu0 0.0
        %833 = vmatpush.msra.mxu0 0.0
        %834 = vmatpush.msra.mxu0 0.0
        %835 = vmatpush.msra.mxu0 0.0
        %836 = vmatpush.msra.mxu0 0.0
        %837 = vmatpush.msra.mxu0 0.0
        %838 = vmatpush.msra.mxu0 0.0
        %839 = vmatpush.msra.mxu0 0.0
        %840 = vmatpush.msra.mxu0 0.0
        %841 = vmatpush.msra.mxu0 0.0
        %842 = vmatpush.msra.mxu0 0.0
        %843 = vmatpush.msra.mxu0 0.0
        %844 = vmatpush.msra.mxu0 %v821
        %845 = vmatmul.f32.gmra.mxu0 %v817
        %v846 = vpop.f32.mrf.mxu0
        %v847 = vadd.f32 %v812, %v846
        %848 = vdwg.mxu0
        %849 = vmatpush.msra.mxu0 0.0
        %850 = vmatpush.msra.mxu0 0.0
        %851 = vmatpush.msra.mxu0 0.0
        %852 = vmatpush.msra.mxu0 0.0
        %853 = vmatpush.msra.mxu0 0.0
        %854 = vmatpush.msra.mxu0 0.0
        %855 = vmatpush.msra.mxu0 0.0
        %856 = vmatpush.msra.mxu0 0.0
        %857 = vmatpush.msra.mxu0 0.0
        %858 = vmatpush.msra.mxu0 0.0
        %859 = vmatpush.msra.mxu0 0.0
        %860 = vmatpush.msra.mxu0 0.0
        %861 = vmatpush.msra.mxu0 0.0
        %862 = vmatpush.msra.mxu0 0.0
        %863 = vmatpush.msra.mxu0 0.0
        %864 = vmatpush.msra.mxu0 %v824
        %865 = vmatmul.f32.gmra.mxu0 %v817
        %v866 = vpop.f32.mrf.mxu0
        %v867 = vadd.f32 %v812, %v866
        %868 = vdwg.mxu0
        %869 = vmatpush.msra.mxu0 0.0
        %870 = vmatpush.msra.mxu0 0.0
        %871 = vmatpush.msra.mxu0 0.0
        %872 = vmatpush.msra.mxu0 0.0
        %873 = vmatpush.msra.mxu0 0.0
        %874 = vmatpush.msra.mxu0 0.0
        %875 = vmatpush.msra.mxu0 0.0
        %876 = vmatpush.msra.mxu0 0.0
        %877 = vmatpush.msra.mxu0 0.0
        %878 = vmatpush.msra.mxu0 0.0
        %879 = vmatpush.msra.mxu0 0.0
        %880 = vmatpush.msra.mxu0 0.0
        %881 = vmatpush.msra.mxu0 0.0
        %882 = vmatpush.msra.mxu0 0.0
        %883 = vmatpush.msra.mxu0 0.0
        %884 = vmatpush.msra.mxu0 %v827
        %885 = vmatmul.f32.gmra.mxu0 %v817
        %v886 = vpop.f32.mrf.mxu0
        %v887 = vadd.f32 %v812, %v886
        %888 = vdwg.mxu0
        %v889 = vadd.f32 %v678, %v430
        %v890 = vadd.f32 %v679, %v431
        %v891 = vadd.f32 %v680, %v432
        %v892 = vadd.f32 %v681, %v428
        %897 = vrot.lane.b32.xlu0 %v889, 104
        %v898 = vpop.permute.xlu0 %897
        %899 = vrot.lane.b32.xlu0 %v890, 104
        %v900 = vpop.permute.xlu0 %899
        %901 = vrot.lane.b32.xlu0 %v891, 104
        %v902 = vpop.permute.xlu0 %901
        %903 = vrot.lane.b32.xlu0 %v892, 104
        %v904 = vpop.permute.xlu0 %903
        %v905 = vsel %vm413, %v898, %v900
        %v906 = vsel %vm413, %v900, %v902
        %v907 = vsel %vm413, %v902, %v904
        %911 = vst [vmem:[%s357] sm:$0xf] %v905
        %912 = vst [vmem:[%s357 + $0x8] sm:$0xf] %v906
        %913 = vst [vmem:[%s357 + $0x10] sm:$0xf] %v907
        %v914 = vadd.f32 %v847, %v694
        %v915 = vadd.f32 %v867, %v695
        %v916 = vadd.f32 %v887, %v696
        %v920 = vrot.slane %v914, 4
        %v921 = vrot.slane %v915, 4
        %v922 = vrot.slane %v916, 4
        %926 = vst [vmem:[%s357] sm:$0xf0] %v920
        %927 = vst [vmem:[%s357 + $0x8] sm:$0xf0] %v921
        %928 = vst [vmem:[%s357 + $0x10] sm:$0xf0] %v922
        %v929 = vld [vmem:[%s299] sm:$0xff]
        %v930 = vld [vmem:[%s299 + $0x8] sm:$0xf]
        %s933 = scalar_lea.vmem [#allocation1], 1
        %934 = vst [vmem:[%s933] ss:$2 sm:$0xff] %v929
        %s935 = scalar_lea.vmem [#allocation1], 17
        %936 = vst [vmem:[%s935] ss:$2 sm:$0xff] %v930
        %v937 = vld.sshfl [vmem:[#allocation1] sm:$0xff pattern:$0x75316420]
        %v938 = vld.sshfl [vmem:[#allocation1 + $0x8] sm:$0xff pattern:$0x75316420]
        %v939 = vld.sshfl [vmem:[#allocation1 + $0x10] sm:$0xff pattern:$0x75316420]
        %v943 = vadd.f32 %v847, %v937
        %v944 = vadd.f32 %v867, %v938
        %v945 = vadd.f32 %v887, %v939
        %v949 = vrot.slane %v943, 4
        %v950 = vrot.slane %v944, 4
        %v951 = vrot.slane %v945, 4
        %955 = vst [vmem:[%s357 + $0x18] sm:$0xf] %v949
        %956 = vst [vmem:[%s357 + $0x20] sm:$0xf] %v950
        %957 = vst [vmem:[%s357 + $0x28] sm:$0xf] %v951
        %s958 = scalar_lea.vmem %s279, 32 [#allocation2]
        %v959 = vld [vmem:[%s958] sm:$0xff]
        %v960 = vld [vmem:[%s958 + $0x8] sm:$0xff]
        %v961 = vld [vmem:[%s958 + $0x10] sm:$0xff]
        %v962 = vld [vmem:[%s958 + $0x18] sm:$0xff]
        %s963 = scalar_lea.vmem %s289, 32 [#allocation4]
        %v964 = vld [vmem:[%s963] sm:$0xff]
        %v965 = vld [vmem:[%s963 + $0x8] sm:$0xff]
        %v966 = vld [vmem:[%s963 + $0x10] sm:$0xff]
        %v967 = vld [vmem:[%s963 + $0x18] sm:$0xff]
        %s968 = scalar_lea.vmem %s350, 8
        %v969 = vld [vmem:[%s968] sm:$0xff]
        %974 = vrot.lane.b32.xlu0 %v959, 127
        %v975 = vpop.permute.xlu0 %974
        %976 = vrot.lane.b32.xlu0 %v960, 127
        %v977 = vpop.permute.xlu0 %976
        %978 = vrot.lane.b32.xlu0 %v961, 127
        %v979 = vpop.permute.xlu0 %978
        %980 = vrot.lane.b32.xlu0 %v962, 127
        %v981 = vpop.permute.xlu0 %980
        %v982 = vsel %vm381, %v975, %v977
        %v983 = vsel %vm381, %v977, %v979
        %v984 = vsel %vm381, %v979, %v981
        %989 = vrot.lane.b32.xlu0 %v959, 126
        %v990 = vpop.permute.xlu0 %989
        %991 = vrot.lane.b32.xlu0 %v960, 126
        %v992 = vpop.permute.xlu0 %991
        %993 = vrot.lane.b32.xlu0 %v961, 126
        %v994 = vpop.permute.xlu0 %993
        %995 = vrot.lane.b32.xlu0 %v962, 126
        %v996 = vpop.permute.xlu0 %995
        %v997 = vsel %vm397, %v990, %v992
        %v998 = vsel %vm397, %v992, %v994
        %v999 = vsel %vm397, %v994, %v996
        %1004 = vrot.lane.b32.xlu0 %v959, 104
        %v1005 = vpop.permute.xlu0 %1004
        %1006 = vrot.lane.b32.xlu0 %v960, 104
        %v1007 = vpop.permute.xlu0 %1006
        %1008 = vrot.lane.b32.xlu0 %v961, 104
        %v1009 = vpop.permute.xlu0 %1008
        %1010 = vrot.lane.b32.xlu0 %v962, 104
        %v1011 = vpop.permute.xlu0 %1010
        %v1012 = vsel %vm413, %v1005, %v1007
        %v1013 = vsel %vm413, %v1007, %v1009
        %v1014 = vsel %vm413, %v1009, %v1011
        %1019 = vrot.lane.b32.xlu0 %v959, 103
        %v1020 = vpop.permute.xlu0 %1019
        %1021 = vrot.lane.b32.xlu0 %v960, 103
        %v1022 = vpop.permute.xlu0 %1021
        %1023 = vrot.lane.b32.xlu0 %v961, 103
        %v1024 = vpop.permute.xlu0 %1023
        %1025 = vrot.lane.b32.xlu0 %v962, 103
        %v1026 = vpop.permute.xlu0 %1025
        %v1027 = vsel %vm429, %v1020, %v1022
        %v1028 = vsel %vm429, %v1022, %v1024
        %v1029 = vsel %vm429, %v1024, %v1026
        %1034 = vrot.lane.b32.xlu0 %v959, 102
        %v1035 = vpop.permute.xlu0 %1034
        %1036 = vrot.lane.b32.xlu0 %v960, 102
        %v1037 = vpop.permute.xlu0 %1036
        %1038 = vrot.lane.b32.xlu0 %v961, 102
        %v1039 = vpop.permute.xlu0 %1038
        %1040 = vrot.lane.b32.xlu0 %v962, 102
        %v1041 = vpop.permute.xlu0 %1040
        %v1042 = vsel %vm445, %v1035, %v1037
        %v1043 = vsel %vm445, %v1037, %v1039
        %v1044 = vsel %vm445, %v1039, %v1041
        %1049 = vmatpush.msra.mxu0 0.0
        %1050 = vmatpush.msra.mxu0 0.0
        %1051 = vmatpush.msra.mxu0 0.0
        %1052 = vmatpush.msra.mxu0 0.0
        %1053 = vmatpush.msra.mxu0 0.0
        %1054 = vmatpush.msra.mxu0 0.0
        %1055 = vmatpush.msra.mxu0 0.0
        %1056 = vmatpush.msra.mxu0 0.0
        %1057 = vmatpush.msra.mxu0 0.0
        %1058 = vmatpush.msra.mxu0 0.0
        %1059 = vmatpush.msra.mxu0 %v1042
        %1060 = vmatpush.msra.mxu0 %v1027
        %1061 = vmatpush.msra.mxu0 %v1012
        %1062 = vmatpush.msra.mxu0 %v997
        %1063 = vmatpush.msra.mxu0 %v982
        %1064 = vmatpush.msra.mxu0 %v959
        %1065 = vmatmul.f32.gmra.mxu0 %v455
        %v1066 = vpop.f32.mrf.mxu0
        %v1067 = vadd.f32 0.0, %v1066
        %1068 = vdwg.mxu0
        %1069 = vmatpush.msra.mxu0 0.0
        %1070 = vmatpush.msra.mxu0 0.0
        %1071 = vmatpush.msra.mxu0 0.0
        %1072 = vmatpush.msra.mxu0 0.0
        %1073 = vmatpush.msra.mxu0 0.0
        %1074 = vmatpush.msra.mxu0 0.0
        %1075 = vmatpush.msra.mxu0 0.0
        %1076 = vmatpush.msra.mxu0 0.0
        %1077 = vmatpush.msra.mxu0 0.0
        %1078 = vmatpush.msra.mxu0 0.0
        %1079 = vmatpush.msra.mxu0 %v1043
        %1080 = vmatpush.msra.mxu0 %v1028
        %1081 = vmatpush.msra.mxu0 %v1013
        %1082 = vmatpush.msra.mxu0 %v998
        %1083 = vmatpush.msra.mxu0 %v983
        %1084 = vmatpush.msra.mxu0 %v960
        %1085 = vmatmul.f32.gmra.mxu0 %v455
        %v1086 = vpop.f32.mrf.mxu0
        %v1087 = vadd.f32 0.0, %v1086
        %1088 = vdwg.mxu0
        %1089 = vmatpush.msra.mxu0 0.0
        %1090 = vmatpush.msra.mxu0 0.0
        %1091 = vmatpush.msra.mxu0 0.0
        %1092 = vmatpush.msra.mxu0 0.0
        %1093 = vmatpush.msra.mxu0 0.0
        %1094 = vmatpush.msra.mxu0 0.0
        %1095 = vmatpush.msra.mxu0 0.0
        %1096 = vmatpush.msra.mxu0 0.0
        %1097 = vmatpush.msra.mxu0 0.0
        %1098 = vmatpush.msra.mxu0 0.0
        %1099 = vmatpush.msra.mxu0 %v1044
        %1100 = vmatpush.msra.mxu0 %v1029
        %1101 = vmatpush.msra.mxu0 %v1014
        %1102 = vmatpush.msra.mxu0 %v999
        %1103 = vmatpush.msra.mxu0 %v984
        %1104 = vmatpush.msra.mxu0 %v961
        %1105 = vmatmul.f32.gmra.mxu0 %v455
        %v1106 = vpop.f32.mrf.mxu0
        %v1107 = vadd.f32 0.0, %v1106
        %1108 = vdwg.mxu0
        %1109 = vmatpush.msra.mxu0 0.0
        %1110 = vmatpush.msra.mxu0 0.0
        %1111 = vmatpush.msra.mxu0 0.0
        %1112 = vmatpush.msra.mxu0 0.0
        %1113 = vmatpush.msra.mxu0 0.0
        %1114 = vmatpush.msra.mxu0 0.0
        %1115 = vmatpush.msra.mxu0 0.0
        %1116 = vmatpush.msra.mxu0 0.0
        %1117 = vmatpush.msra.mxu0 0.0
        %1118 = vmatpush.msra.mxu0 0.0
        %1119 = vmatpush.msra.mxu0 %v1041
        %1120 = vmatpush.msra.mxu0 %v1026
        %1121 = vmatpush.msra.mxu0 %v1011
        %1122 = vmatpush.msra.mxu0 %v996
        %1123 = vmatpush.msra.mxu0 %v981
        %1124 = vmatpush.msra.mxu0 %v962
        %1125 = vmatmul.f32.gmra.mxu0 %v455
        %v1126 = vpop.f32.mrf.mxu0
        %v1127 = vadd.f32 0.0, %v1126
        %1128 = vdwg.mxu0
        %1129 = vrot.lane.b32.xlu0 %v959, 79
        %v1130 = vpop.permute.xlu0 %1129
        %1131 = vrot.lane.b32.xlu0 %v960, 79
        %v1132 = vpop.permute.xlu0 %1131
        %1133 = vrot.lane.b32.xlu0 %v961, 79
        %v1134 = vpop.permute.xlu0 %1133
        %1135 = vrot.lane.b32.xlu0 %v962, 79
        %v1136 = vpop.permute.xlu0 %1135
        %v1137 = vsel %vm547, %v1130, %v1132
        %v1138 = vsel %vm547, %v1132, %v1134
        %v1139 = vsel %vm547, %v1134, %v1136
        %1143 = vmatpush.msra.mxu0 0.0
        %1144 = vmatpush.msra.mxu0 0.0
        %1145 = vmatpush.msra.mxu0 0.0
        %1146 = vmatpush.msra.mxu0 0.0
        %1147 = vmatpush.msra.mxu0 0.0
        %1148 = vmatpush.msra.mxu0 0.0
        %1149 = vmatpush.msra.mxu0 0.0
        %1150 = vmatpush.msra.mxu0 0.0
        %1151 = vmatpush.msra.mxu0 0.0
        %1152 = vmatpush.msra.mxu0 0.0
        %1153 = vmatpush.msra.mxu0 0.0
        %1154 = vmatpush.msra.mxu0 0.0
        %1155 = vmatpush.msra.mxu0 0.0
        %1156 = vmatpush.msra.mxu0 0.0
        %1157 = vmatpush.msra.mxu0 0.0
        %1158 = vmatpush.msra.mxu0 %v1137
        %1159 = vmatmul.f32.gmra.mxu0 %v555
        %v1160 = vpop.f32.mrf.mxu0
        %v1161 = vadd.f32 0.0, %v1160
        %1162 = vdwg.mxu0
        %1163 = vmatpush.msra.mxu0 0.0
        %1164 = vmatpush.msra.mxu0 0.0
        %1165 = vmatpush.msra.mxu0 0.0
        %1166 = vmatpush.msra.mxu0 0.0
        %1167 = vmatpush.msra.mxu0 0.0
        %1168 = vmatpush.msra.mxu0 0.0
        %1169 = vmatpush.msra.mxu0 0.0
        %1170 = vmatpush.msra.mxu0 0.0
        %1171 = vmatpush.msra.mxu0 0.0
        %1172 = vmatpush.msra.mxu0 0.0
        %1173 = vmatpush.msra.mxu0 0.0
        %1174 = vmatpush.msra.mxu0 0.0
        %1175 = vmatpush.msra.mxu0 0.0
        %1176 = vmatpush.msra.mxu0 0.0
        %1177 = vmatpush.msra.mxu0 0.0
        %1178 = vmatpush.msra.mxu0 %v1138
        %1179 = vmatmul.f32.gmra.mxu0 %v555
        %v1180 = vpop.f32.mrf.mxu0
        %v1181 = vadd.f32 0.0, %v1180
        %1182 = vdwg.mxu0
        %1183 = vmatpush.msra.mxu0 0.0
        %1184 = vmatpush.msra.mxu0 0.0
        %1185 = vmatpush.msra.mxu0 0.0
        %1186 = vmatpush.msra.mxu0 0.0
        %1187 = vmatpush.msra.mxu0 0.0
        %1188 = vmatpush.msra.mxu0 0.0
        %1189 = vmatpush.msra.mxu0 0.0
        %1190 = vmatpush.msra.mxu0 0.0
        %1191 = vmatpush.msra.mxu0 0.0
        %1192 = vmatpush.msra.mxu0 0.0
        %1193 = vmatpush.msra.mxu0 0.0
        %1194 = vmatpush.msra.mxu0 0.0
        %1195 = vmatpush.msra.mxu0 0.0
        %1196 = vmatpush.msra.mxu0 0.0
        %1197 = vmatpush.msra.mxu0 0.0
        %1198 = vmatpush.msra.mxu0 %v1139
        %1199 = vmatmul.f32.gmra.mxu0 %v555
        %v1200 = vpop.f32.mrf.mxu0
        %v1201 = vadd.f32 0.0, %v1200
        %1202 = vdwg.mxu0
        %1206 = vrot.lane.b32.xlu0 %v1161, 24
        %v1207 = vpop.permute.xlu0 %1206
        %1208 = vrot.lane.b32.xlu0 %v1181, 24
        %v1209 = vpop.permute.xlu0 %1208
        %1210 = vrot.lane.b32.xlu0 %v1201, 24
        %v1211 = vpop.permute.xlu0 %1210
        %v1212 = vsel %vm626, %v1207, %v1209
        %v1213 = vsel %vm626, %v1209, %v1211
        %v1218 = vadd.f32 %v1067, %v1207
        %v1219 = vadd.f32 %v1087, %v1212
        %v1220 = vadd.f32 %v1107, %v1213
        %v1221 = vadd.f32 %v1127, %v1211
        %1223 = vset.pattern.permute.xlu0 0
        %1224 = vperm.xlu0 %1223, %v969
        %v1225 = vpop.permute.xlu0 %1224
        %v1227 = vadd.f32 %v1218, %v1225
        %v1228 = vadd.f32 %v1219, %v1225
        %v1229 = vadd.f32 %v1220, %v1225
        %v1230 = vadd.f32 %v1221, %v1225
        %v1231 = vtanh.pop %v1227
        %v1232 = vtanh.pop %v1228
        %v1233 = vtanh.pop %v1229
        %v1234 = vtanh.pop %v1230
        %v1235 = vmul.f32 %v1227, 0.5
        %v1236 = vmul.f32 %v1228, 0.5
        %v1237 = vmul.f32 %v1229, 0.5
        %v1238 = vmul.f32 %v1230, 0.5
        %v1239 = vtanh.pop %v1235
        %v1240 = vtanh.pop %v1236
        %v1241 = vtanh.pop %v1237
        %v1242 = vtanh.pop %v1238
        %v1243 = vmul.f32 %v1239, 0.5
        %v1244 = vmul.f32 %v1240, 0.5
        %v1245 = vmul.f32 %v1241, 0.5
        %v1246 = vmul.f32 %v1242, 0.5
        %v1247 = vadd.f32 %v1243, 0.5
        %v1248 = vadd.f32 %v1244, 0.5
        %v1249 = vadd.f32 %v1245, 0.5
        %v1250 = vadd.f32 %v1246, 0.5
        %v1255 = vrot.slane %v1247, 4
        %v1256 = vrot.slane %v1248, 4
        %v1257 = vrot.slane %v1249, 4
        %v1258 = vrot.slane %v1250, 4
        %v1263 = vmul.f32 %v1231, %v1255
        %v1264 = vmul.f32 %v1232, %v1256
        %v1265 = vmul.f32 %v1233, %v1257
        %v1266 = vmul.f32 %v1234, %v1258
        %1271 = vrot.lane.b32.xlu0 %v964, 127
        %v1272 = vpop.permute.xlu0 %1271
        %1273 = vrot.lane.b32.xlu0 %v965, 127
        %v1274 = vpop.permute.xlu0 %1273
        %1275 = vrot.lane.b32.xlu0 %v966, 127
        %v1276 = vpop.permute.xlu0 %1275
        %1277 = vrot.lane.b32.xlu0 %v967, 127
        %v1278 = vpop.permute.xlu0 %1277
        %v1279 = vsel %vm381, %v1272, %v1274
        %v1280 = vsel %vm381, %v1274, %v1276
        %v1281 = vsel %vm381, %v1276, %v1278
        %1285 = vrot.lane.b32.xlu0 %v964, 126
        %v1286 = vpop.permute.xlu0 %1285
        %1287 = vrot.lane.b32.xlu0 %v965, 126
        %v1288 = vpop.permute.xlu0 %1287
        %1289 = vrot.lane.b32.xlu0 %v966, 126
        %v1290 = vpop.permute.xlu0 %1289
        %1291 = vrot.lane.b32.xlu0 %v967, 126
        %v1292 = vpop.permute.xlu0 %1291
        %v1293 = vsel %vm397, %v1286, %v1288
        %v1294 = vsel %vm397, %v1288, %v1290
        %v1295 = vsel %vm397, %v1290, %v1292
        %1299 = vset.pattern.permute.xlu0 1
        %1300 = vperm.xlu0 %1299, %v969
        %v1301 = vpop.permute.xlu0 %1300
        %1303 = vmatpush.msra.mxu0 0.0
        %1304 = vmatpush.msra.mxu0 0.0
        %1305 = vmatpush.msra.mxu0 0.0
        %1306 = vmatpush.msra.mxu0 0.0
        %1307 = vmatpush.msra.mxu0 0.0
        %1308 = vmatpush.msra.mxu0 0.0
        %1309 = vmatpush.msra.mxu0 0.0
        %1310 = vmatpush.msra.mxu0 0.0
        %1311 = vmatpush.msra.mxu0 0.0
        %1312 = vmatpush.msra.mxu0 0.0
        %1313 = vmatpush.msra.mxu0 0.0
        %1314 = vmatpush.msra.mxu0 0.0
        %1315 = vmatpush.msra.mxu0 %v1067
        %1316 = vmatpush.msra.mxu0 %v1293
        %1317 = vmatpush.msra.mxu0 %v1279
        %1318 = vmatpush.msra.mxu0 %v964
        %1319 = vmatmul.f32.gmra.mxu0 %v721
        %v1320 = vpop.f32.mrf.mxu0
        %v1321 = vadd.f32 %v1301, %v1320
        %1322 = vdwg.mxu0
        %1323 = vmatpush.msra.mxu0 0.0
        %1324 = vmatpush.msra.mxu0 0.0
        %1325 = vmatpush.msra.mxu0 0.0
        %1326 = vmatpush.msra.mxu0 0.0
        %1327 = vmatpush.msra.mxu0 0.0
        %1328 = vmatpush.msra.mxu0 0.0
        %1329 = vmatpush.msra.mxu0 0.0
        %1330 = vmatpush.msra.mxu0 0.0
        %1331 = vmatpush.msra.mxu0 0.0
        %1332 = vmatpush.msra.mxu0 0.0
        %1333 = vmatpush.msra.mxu0 0.0
        %1334 = vmatpush.msra.mxu0 0.0
        %1335 = vmatpush.msra.mxu0 %v1087
        %1336 = vmatpush.msra.mxu0 %v1294
        %1337 = vmatpush.msra.mxu0 %v1280
        %1338 = vmatpush.msra.mxu0 %v965
        %1339 = vmatmul.f32.gmra.mxu0 %v721
        %v1340 = vpop.f32.mrf.mxu0
        %v1341 = vadd.f32 %v1301, %v1340
        %1342 = vdwg.mxu0
        %1343 = vmatpush.msra.mxu0 0.0
        %1344 = vmatpush.msra.mxu0 0.0
        %1345 = vmatpush.msra.mxu0 0.0
        %1346 = vmatpush.msra.mxu0 0.0
        %1347 = vmatpush.msra.mxu0 0.0
        %1348 = vmatpush.msra.mxu0 0.0
        %1349 = vmatpush.msra.mxu0 0.0
        %1350 = vmatpush.msra.mxu0 0.0
        %1351 = vmatpush.msra.mxu0 0.0
        %1352 = vmatpush.msra.mxu0 0.0
        %1353 = vmatpush.msra.mxu0 0.0
        %1354 = vmatpush.msra.mxu0 0.0
        %1355 = vmatpush.msra.mxu0 %v1107
        %1356 = vmatpush.msra.mxu0 %v1295
        %1357 = vmatpush.msra.mxu0 %v1281
        %1358 = vmatpush.msra.mxu0 %v966
        %1359 = vmatmul.f32.gmra.mxu0 %v721
        %v1360 = vpop.f32.mrf.mxu0
        %v1361 = vadd.f32 %v1301, %v1360
        %1362 = vdwg.mxu0
        %v1363 = vtanh.pop %v1321
        %v1364 = vtanh.pop %v1341
        %v1365 = vtanh.pop %v1361
        %v1366 = vmul.f32 %v1321, 0.5
        %v1367 = vmul.f32 %v1341, 0.5
        %v1368 = vmul.f32 %v1361, 0.5
        %v1369 = vtanh.pop %v1366
        %v1370 = vtanh.pop %v1367
        %v1371 = vtanh.pop %v1368
        %v1372 = vmul.f32 %v1369, 0.5
        %v1373 = vmul.f32 %v1370, 0.5
        %v1374 = vmul.f32 %v1371, 0.5
        %v1375 = vadd.f32 %v1372, 0.5
        %v1376 = vadd.f32 %v1373, 0.5
        %v1377 = vadd.f32 %v1374, 0.5
        %v1381 = vrot.slane %v1375, 4
        %v1382 = vrot.slane %v1376, 4
        %v1383 = vrot.slane %v1377, 4
        %v1387 = vmul.f32 %v1363, %v1381
        %v1388 = vmul.f32 %v1364, %v1382
        %v1389 = vmul.f32 %v1365, %v1383
        %v1391 = vsel %vm819, %v1387, 0
        %v1394 = vsel %vm819, %v1388, 0
        %v1397 = vsel %vm819, %v1389, 0
        %1399 = vmatpush.msra.mxu0 0.0
        %1400 = vmatpush.msra.mxu0 0.0
        %1401 = vmatpush.msra.mxu0 0.0
        %1402 = vmatpush.msra.mxu0 0.0
        %1403 = vmatpush.msra.mxu0 0.0
        %1404 = vmatpush.msra.mxu0 0.0
        %1405 = vmatpush.msra.mxu0 0.0
        %1406 = vmatpush.msra.mxu0 0.0
        %1407 = vmatpush.msra.mxu0 0.0
        %1408 = vmatpush.msra.mxu0 0.0
        %1409 = vmatpush.msra.mxu0 0.0
        %1410 = vmatpush.msra.mxu0 0.0
        %1411 = vmatpush.msra.mxu0 0.0
        %1412 = vmatpush.msra.mxu0 0.0
        %1413 = vmatpush.msra.mxu0 0.0
        %1414 = vmatpush.msra.mxu0 %v1391
        %1415 = vmatmul.f32.gmra.mxu0 %v817
        %v1416 = vpop.f32.mrf.mxu0
        %v1417 = vadd.f32 %v812, %v1416
        %1418 = vdwg.mxu0
        %1419 = vmatpush.msra.mxu0 0.0
        %1420 = vmatpush.msra.mxu0 0.0
        %1421 = vmatpush.msra.mxu0 0.0
        %1422 = vmatpush.msra.mxu0 0.0
        %1423 = vmatpush.msra.mxu0 0.0
        %1424 = vmatpush.msra.mxu0 0.0
        %1425 = vmatpush.msra.mxu0 0.0
        %1426 = vmatpush.msra.mxu0 0.0
        %1427 = vmatpush.msra.mxu0 0.0
        %1428 = vmatpush.msra.mxu0 0.0
        %1429 = vmatpush.msra.mxu0 0.0
        %1430 = vmatpush.msra.mxu0 0.0
        %1431 = vmatpush.msra.mxu0 0.0
        %1432 = vmatpush.msra.mxu0 0.0
        %1433 = vmatpush.msra.mxu0 0.0
        %1434 = vmatpush.msra.mxu0 %v1394
        %1435 = vmatmul.f32.gmra.mxu0 %v817
        %v1436 = vpop.f32.mrf.mxu0
        %v1437 = vadd.f32 %v812, %v1436
        %1438 = vdwg.mxu0
        %1439 = vmatpush.msra.mxu0 0.0
        %1440 = vmatpush.msra.mxu0 0.0
        %1441 = vmatpush.msra.mxu0 0.0
        %1442 = vmatpush.msra.mxu0 0.0
        %1443 = vmatpush.msra.mxu0 0.0
        %1444 = vmatpush.msra.mxu0 0.0
        %1445 = vmatpush.msra.mxu0 0.0
        %1446 = vmatpush.msra.mxu0 0.0
        %1447 = vmatpush.msra.mxu0 0.0
        %1448 = vmatpush.msra.mxu0 0.0
        %1449 = vmatpush.msra.mxu0 0.0
        %1450 = vmatpush.msra.mxu0 0.0
        %1451 = vmatpush.msra.mxu0 0.0
        %1452 = vmatpush.msra.mxu0 0.0
        %1453 = vmatpush.msra.mxu0 0.0
        %1454 = vmatpush.msra.mxu0 %v1397
        %1455 = vmatmul.f32.gmra.mxu0 %v817
        %v1456 = vpop.f32.mrf.mxu0
        %v1457 = vadd.f32 %v812, %v1456
        %1458 = vdwg.mxu0
        %v1459 = vadd.f32 %v1263, %v1027
        %v1460 = vadd.f32 %v1264, %v1028
        %v1461 = vadd.f32 %v1265, %v1029
        %v1462 = vadd.f32 %v1266, %v1026
        %1467 = vrot.lane.b32.xlu0 %v1459, 104
        %v1468 = vpop.permute.xlu0 %1467
        %1469 = vrot.lane.b32.xlu0 %v1460, 104
        %v1470 = vpop.permute.xlu0 %1469
        %1471 = vrot.lane.b32.xlu0 %v1461, 104
        %v1472 = vpop.permute.xlu0 %1471
        %1473 = vrot.lane.b32.xlu0 %v1462, 104
        %v1474 = vpop.permute.xlu0 %1473
        %v1475 = vsel %vm413, %v1468, %v1470
        %v1476 = vsel %vm413, %v1470, %v1472
        %v1477 = vsel %vm413, %v1472, %v1474
        %s1481 = scalar_lea.vmem %s357, 48
        %1482 = vst [vmem:[%s1481] sm:$0xf] %v1475
        %1483 = vst [vmem:[%s1481 + $0x8] sm:$0xf] %v1476
        %1484 = vst [vmem:[%s1481 + $0x10] sm:$0xf] %v1477
        %v1485 = vadd.f32 %v1417, %v1279
        %v1486 = vadd.f32 %v1437, %v1280
        %v1487 = vadd.f32 %v1457, %v1281
        %v1491 = vrot.slane %v1485, 4
        %v1492 = vrot.slane %v1486, 4
        %v1493 = vrot.slane %v1487, 4
        %1497 = vst [vmem:[%s1481] sm:$0xf0] %v1491
        %1498 = vst [vmem:[%s1481 + $0x8] sm:$0xf0] %v1492
        %1499 = vst [vmem:[%s1481 + $0x10] sm:$0xf0] %v1493
        %s1500 = scalar_lea.vmem %s299, 12 [#allocation6]
        %v1501 = vld [vmem:[%s1500] sm:$0xff]
        %v1502 = vld [vmem:[%s1500 + $0x8] sm:$0xf]
        %s1505 = scalar_lea.vmem [#allocation1], 1
        %1506 = vst [vmem:[%s1505] ss:$2 sm:$0xff] %v1501
        %s1507 = scalar_lea.vmem [#allocation1], 17
        %1508 = vst [vmem:[%s1507] ss:$2 sm:$0xff] %v1502
        %v1509 = vld.sshfl [vmem:[#allocation1] sm:$0xff pattern:$0x75316420]
        %v1510 = vld.sshfl [vmem:[#allocation1 + $0x8] sm:$0xff pattern:$0x75316420]
        %v1511 = vld.sshfl [vmem:[#allocation1 + $0x10] sm:$0xff pattern:$0x75316420]
        %v1515 = vadd.f32 %v1417, %v1509
        %v1516 = vadd.f32 %v1437, %v1510
        %v1517 = vadd.f32 %v1457, %v1511
        %v1521 = vrot.slane %v1515, 4
        %v1522 = vrot.slane %v1516, 4
        %v1523 = vrot.slane %v1517, 4
        %1527 = vst [vmem:[%s1481 + $0x18] sm:$0xf] %v1521
        %1528 = vst [vmem:[%s1481 + $0x20] sm:$0xf] %v1522
        %1529 = vst [vmem:[%s1481 + $0x28] sm:$0xf] %v1523
        %s1530 = smul.u32 2, %s22
        %p1531 = scmp.lt.s32.totalorder %s1530, 3
        %s1532 = scalar_select %p1531, %s1530, 3
        %s1533 = smul.addr %s1532, 6
        %s1534 = smul.addr %s1533, 8
        %s1535 = scalar_lea.vmem %s5, %s1534
        // Predicated region
        $region53: #{tpu_custom_call.1} parent=39 // pred_check
          %p1536 = pneg %p165
        $region54: #{tpu_custom_call.1} parent=39 // pred_check_branch
          %1538 = sbr.rel (%p1536) target = $region56
        $region55: #{tpu_custom_call.1} parent=39 // pred_region
          %s1539 = smul.u32 2, %s22
        $region56: #{tpu_custom_call.1} parent=39 // pred_fallthru
          _
      $region40: #{tpu_custom_call.1} parent=5 // pred_fallthru
        _
      %p1540 = scmp.le.s32.totalorder 2, %s17
      // Predicated region
      $region57: #{tpu_custom_call.1} parent=5 // pred_check
        %p1541 = pneg %p1540
      $region58: #{tpu_custom_call.1} parent=5 // pred_check_branch
        %1543 = sbr.rel (%p1541) target = $region60
      $region59: #{tpu_custom_call.1} parent=5 // pred_region
        %s1544 = ssub.s32 %s17, 2
        // Predicated region
        $region61: #{tpu_custom_call.1} parent=59 // pred_check
          %p1545 = pneg %p171
        $region62: #{tpu_custom_call.1} parent=59 // pred_check_branch
          %1547 = sbr.rel (%p1545) target = $region64
        $region63: #{tpu_custom_call.1} parent=59 // pred_region
          %s1548 = smul.u32 2, %s23
          %p1549 = scmp.lt.s32.totalorder %s1548, 3
          %s1550 = scalar_select %p1549, %s1548, 3
          %s1551 = smul.addr %s1550, 6
          %s1552 = smul.addr %s1551, 8
          %s1553 = scalar_lea.vmem %s5, %s1552
        $region64: #{tpu_custom_call.1} parent=59 // pred_fallthru
          _
      $region60: #{tpu_custom_call.1} parent=5 // pred_fallthru
        _
    $region6: #{tpu_custom_call.1} parent=1 // loop_footer
      %s21 = sadd.s32 1, %s17
    $region7: #{tpu_custom_call.1} parent=1 // loop_footer_branch
      %16 = sbr.rel target = $region3
    $region8: #{tpu_custom_call.1} parent=1 // loop_exit
      _
    %1554 = vsyncpa [#allocation3], 1
    %s1555 = scalar_lea.sflag [#allocation3], 1
    %1556 = vsyncpa %s1555, 1
    %1557 = vsyncpa [#allocation5], 1
    %s1558 = scalar_lea.sflag [#allocation5], 1
    %1559 = vsyncpa %s1558, 1

</llo_original>
